<compile_context>
chip_gen: v7x
topology: tpu7x:2x2x1
jax: 0.10.0
libtpu: 0.0.40
codegen_flags: <defaults>
</compile_context>

<pallas_src>
import math

import jax
import jax.numpy as jnp
import numpy as np
from jax.experimental import pallas as pl
from jax.experimental.pallas import tpu as pltpu

# Small, module-consistent sizes (modes <= S//2 + 1).
MODES = 8
WIDTH = 8
TIME_HISTORY = 1
TIME_FUTURE = 1
BATCH = 2
S = 16
N_LAYERS = 4
FC1_DIM = 128


def _erf_approx(x):
    # Abramowitz & Stegun 7.1.26 (~1.5e-7 abs err) built from exp/abs/where.
    # The divide is an EUP approximate reciprocal + one Newton refinement
    # (relative error ~eps^2), so only mul/add land on the VALU.
    a1, a2, a3, a4, a5 = 0.254829592, -0.284496736, 1.421413741, -1.453152027, 1.061405429
    p = 0.3275911
    sgn = jnp.where(x >= 0.0, 1.0, -1.0)
    ax = jnp.abs(x)
    denom = 1.0 + p * ax
    t = pl.reciprocal(denom, approx=True)
    t = t * (2.0 - denom * t)                      # Newton step
    poly = ((((a5 * t + a4) * t + a3) * t + a2) * t + a1) * t
    return sgn * (1.0 - poly * jnp.exp(-ax * ax))


def _gelu_exact(x):
    # torch.nn.functional.gelu default ("none") = exact erf-based gelu.
    return 0.5 * x * (1.0 + _erf_approx(x * (1.0 / math.sqrt(2.0))))


def fno1d_fused_kernel(x_ref, m0_ref, b0_ref, m1_ref, b1_ref, m2_ref, b2_ref,
                       m3_ref, b3_ref, wfc2_ref, bout_ref, out_ref):
    # One batch-row tile per grid step; every layer is one MXU matmul + bias
    # (+ exact gelu).  Operator shapes:
    #   m0: fc0 + (spectral0 + conv0)          (S*(th+1), S*W)   = (32, 128)
    #   m1: spectral1 + conv1                  (S*W, S*W)        = (128, 128)
    #   m2: spectral2 + conv2                  (S*W, S*W)        = (128, 128)
    #   m3: (spectral3 + conv3) composed w/fc1 (S*W, S*FC1)      = (128, 2048)
    #   fc2 (time_future=1): broadcast-mul by its 128-wide row + lane reduce.
    h = jnp.dot(x_ref[...], m0_ref[...], preferred_element_type=jnp.float32) + b0_ref[...]
    h = _gelu_exact(h)
    h = jnp.dot(h, m1_ref[...], preferred_element_type=jnp.float32) + b1_ref[...]
    h = _gelu_exact(h)
    h = jnp.dot(h, m2_ref[...], preferred_element_type=jnp.float32) + b2_ref[...]
    h = _gelu_exact(h)
    z = jnp.dot(h, m3_ref[...], preferred_element_type=jnp.float32) + b3_ref[...]
    z = _gelu_exact(z)                                          # (bt, S*FC1)

    # fc2: out[b, n] = sum_f z[b, n*128+f] * fc2_w[f] + fc2_b.  Each 128-wide
    # segment is a lane-tile-aligned static slice (free); the reduction runs
    # on the otherwise-idle XLU.  Output lanes are only S*TF=16 wide (masked
    # store) -- negligible at this size per the review.
    w2 = wfc2_ref[...]                                          # (1, FC1_DIM)
    bout = bout_ref[...]                                        # (1, S*TF)
    n_pos = out_ref.shape[1]                                    # TIME_FUTURE == 1
    for n in range(n_pos):
        seg = z[:, n * FC1_DIM:(n + 1) * FC1_DIM]               # (bt, 128)
        col = jnp.sum(seg * w2, axis=-1, keepdims=True)         # (bt, 1)
        out_ref[:, n:n + 1] = col + bout[:, n:n + 1]


def _dft_matrices(s, k_modes):
    """Real-DFT / inverse-real-DFT matrices (float64, host side)."""
    n = np.arange(s)
    k = np.arange(k_modes)
    ang = 2.0 * np.pi * np.outer(k, n) / s                        # (K, S)
    fcos = np.cos(ang)
    fsin = np.sin(ang)
    # irfft weighting: DC (and Nyquist if present) counted once, others twice.
    wk = np.where((k == 0) | ((s % 2 == 0) & (k == s // 2)), 1.0, 2.0)
    icr = fcos.T * wk / s                                         # (S, K)
    ici = -fsin.T * wk / s                                        # (S, K)
    return fcos, fsin, icr, ici


def build_fused_operators(params, s):
    """ONE-TIME host precompute of the fused linear operators (float64 math).

    Call this once per parameter update, OUTSIDE any jit trace (it pulls the
    params to host with device_get), cache the returned tuple, and reuse it
    for every forward call.
    """
    p = {k: np.asarray(jax.device_get(v), dtype=np.float64) for k, v in params.items()}
    fcos, fsin, icr, ici = _dft_matrices(s, MODES)
    eye_s = np.eye(s)

    layer_m, layer_b = [], []
    for l in range(N_LAYERS):
        wr = p['spec_wr'][l]                                      # (W_in, W_out, K)
        wi = p['spec_wi'][l]
        # K_spec[(n,i),(m,o)] reproduces irfft( truncated-modes( W * rfft(x) ) ).
        k_spec = (np.einsum('mk,kn,iok->nimo', icr, fcos, wr)
                  + np.einsum('mk,kn,iok->nimo', icr, fsin, wi)
                  + np.einsum('mk,kn,iok->nimo', ici, fcos, wi)
                  - np.einsum('mk,kn,iok->nimo', ici, fsin, wr)
                  ).reshape(s * WIDTH, s * WIDTH)
        # 1x1 Conv1d == per-position channel matmul == block-diagonal operator.
        k_conv = np.kron(eye_s, p['conv_w'][l][:, :, 0].T)        # (S*W, S*W)
        layer_m.append(k_spec + k_conv)
        layer_b.append(np.tile(p['conv_b'][l], s))                # (S*W,)

    # Fold fc0 (per-position (th+1 -> W) linear) into layer 0.
    a0 = np.kron(eye_s, p['fc0_w'].T)                             # (S*(th+1), S*W)
    b0_flat = np.tile(p['fc0_b'], s)
    m0 = a0 @ layer_m[0]
    b0 = b0_flat @ layer_m[0] + layer_b[0]

    m1, b1 = layer_m[1], layer_b[1]
    m2, b2 = layer_m[2], layer_b[2]

    # Fold fc1 (per-position (W -> FC1) linear) into layer 3 (both linear, no
    # gelu between them in the torch forward).  Kept in f32: bf16 weight
    # quantization over the K=128 contraction risks the 1e-3 tolerance.
    g1 = np.kron(eye_s, p['fc1_w'].T)                             # (S*W, S*FC1)
    m3 = layer_m[3] @ g1
    b3 = layer_b[3] @ g1 + np.tile(p['fc1_b'], s)

    # fc2 (time_future=1): ship only its 128-wide weight row and a per-output
    # bias row; the kernel does broadcast-mul + lane reduction (no kron(I, .)).
    wfc2 = p['fc2_w'].reshape(1, FC1_DIM)                         # (1, 128)
    bout = np.tile(p['fc2_b'], s).reshape(1, s * TIME_FUTURE)     # (1, S*TF)

    as_mat = lambda m: jnp.asarray(np.asarray(m, dtype=np.float32))
    as_row = lambda b: jnp.asarray(np.asarray(b, dtype=np.float32).reshape(1, -1))
    return (as_mat(m0), as_row(b0), as_mat(m1), as_row(b1),
            as_mat(m2), as_row(b2), as_mat(m3), as_row(b3),
            as_mat(wfc2), as_row(bout))


def init_params(key):
    ks = jax.random.split(key, 10)
    scale = 1.0 / (WIDTH * WIDTH)
    b0 = 1.0 / math.sqrt(TIME_HISTORY + 1)
    b1 = 1.0 / math.sqrt(WIDTH)
    b2 = 1.0 / math.sqrt(FC1_DIM)
    return dict(
        fc0_w=jax.random.uniform(ks[0], (WIDTH, TIME_HISTORY + 1), jnp.float32, -b0, b0),
        fc0_b=jax.random.uniform(ks[1], (WIDTH,), jnp.float32, -b0, b0),
        # SpectralConv1d weights: complex (in, out, modes); stored as real/imag parts.
        spec_wr=scale * jax.random.uniform(ks[2], (N_LAYERS, WIDTH, WIDTH, MODES), jnp.float32),
        spec_wi=scale * jax.random.uniform(ks[3], (N_LAYERS, WIDTH, WIDTH, MODES), jnp.float32),
        conv_w=jax.random.uniform(ks[4], (N_LAYERS, WIDTH, WIDTH, 1), jnp.float32, -b1, b1),
        conv_b=jax.random.uniform(ks[5], (N_LAYERS, WIDTH), jnp.float32, -b1, b1),
        fc1_w=jax.random.uniform(ks[6], (FC1_DIM, WIDTH), jnp.float32, -b1, b1),
        fc1_b=jax.random.uniform(ks[7], (FC1_DIM,), jnp.float32, -b1, b1),
        fc2_w=jax.random.uniform(ks[8], (TIME_FUTURE, FC1_DIM), jnp.float32, -b2, b2),
        fc2_b=jax.random.uniform(ks[9], (TIME_FUTURE,), jnp.float32, -b2, b2),
    )


def _pick_batch_tile(b):
    # Whole (small) batch in one grid step; sublane-aligned tiles for large
    # batches so x/out stream while the operators stay VMEM-resident.
    if b <= 256:
        return b
    for t in (512, 256, 128, 64, 32, 16, 8):
        if b % t == 0:
            return t
    return b


def fno1d_forward(u, ops):
    """u: (B, S, time_history) f32, ops: tuple from build_fused_operators.

    Jit-safe: no host-side work.  Amortize weight DMA / launch overhead by
    calling with as large a batch as possible.
    """
    b, s, _ = u.shape
    gridx = jnp.broadcast_to(
        jnp.linspace(0.0, 1.0, s, dtype=jnp.float32).reshape(1, s, 1), (b, s, 1))
    x = jnp.concatenate([u.astype(jnp.float32), gridx], axis=-1)   # (B, S, th+1)
    x_flat = x.reshape(b, s * (TIME_HISTORY + 1))                  # (B, S*(th+1))

    bt = _pick_batch_tile(b)
    grid = (b // bt,)

    row_spec = lambda ncols: pl.BlockSpec((bt, ncols), lambda i: (i, 0))
    # Full-array blocks with a constant index_map: operators stay resident
    # across grid steps (no repeated weight DMA).
    const_spec = lambda arr: pl.BlockSpec(arr.shape, lambda i: (0, 0))

    out_flat = pl.pallas_call(
        fno1d_fused_kernel,
        out_shape=jax.ShapeDtypeStruct((b, s * TIME_FUTURE), jnp.float32),
        grid=grid,
        in_specs=[row_spec(s * (TIME_HISTORY + 1))] + [const_spec(o) for o in ops],
        out_specs=row_spec(s * TIME_FUTURE),
        compiler_params=pltpu.CompilerParams(
            dimension_semantics=("parallel",)),
    )(x_flat, *ops)

    return out_flat.reshape(b, s, TIME_FUTURE)


def fno1d_reference(u, params):
    """Pure-JAX mirror of the PyTorch forward (uses jnp.fft) for validation."""
    hp = jax.lax.Precision.HIGHEST
    b, s, _ = u.shape
    gridx = jnp.broadcast_to(
        jnp.linspace(0.0, 1.0, s, dtype=jnp.float32).reshape(1, s, 1), (b, s, 1))
    x = jnp.concatenate([u, gridx], axis=-1)
    x = jnp.matmul(x, params['fc0_w'].T, precision=hp) + params['fc0_b']
    x = jnp.transpose(x, (0, 2, 1))                                # (B, W, S)
    for l in range(N_LAYERS):
        w_c = (params['spec_wr'][l] + 1j * params['spec_wi'][l]).astype(jnp.complex64)
        x_ft = jnp.fft.rfft(x, axis=-1)
        mix = jnp.einsum('bix,iox->box', x_ft[:, :, :MODES], w_c, precision=hp)
        out_ft = jnp.zeros((b, WIDTH, s // 2 + 1), dtype=jnp.complex64)
        out_ft = out_ft.at[:, :, :MODES].set(mix)
        x1 = jnp.fft.irfft(out_ft, n=s, axis=-1)
        x2 = (jnp.einsum('oi,bis->bos', params['conv_w'][l][:, :, 0], x, precision=hp)
              + params['conv_b'][l][None, :, None])
        x = x1 + x2
        if l < N_LAYERS - 1:
            x = jax.nn.gelu(x, approximate=False)
    x = jnp.transpose(x, (0, 2, 1))
    x = jnp.matmul(x, params['fc1_w'].T, precision=hp) + params['fc1_b']
    x = jax.nn.gelu(x, approximate=False)
    x = jnp.matmul(x, params['fc2_w'].T, precision=hp) + params['fc2_b']
    return x


if __name__ == "__main__":
    key = jax.random.PRNGKey(0)
    pkey, xkey = jax.random.split(key)
    params = init_params(pkey)
    u = jax.random.normal(xkey, (BATCH, S, TIME_HISTORY), jnp.float32)

    # One-time host precompute of the fused operators; cache and reuse (only
    # rebuild when the parameters change).  The jitted forward is then a pure
    # device program whose critical path is the single Pallas kernel.
    ops = build_fused_operators(params, S)
    fno1d = jax.jit(fno1d_forward)

    out = jax.block_until_ready(fno1d(u, ops))
    ref = jax.block_until_ready(fno1d_reference(u, params))

    assert out.shape == (BATCH, S, TIME_FUTURE)
    max_err = float(jnp.max(jnp.abs(out - ref)))
    assert max_err < 1e-3, f"kernel/reference mismatch: {max_err}"
    print("KERNEL_OK")
</pallas_src>

<mosaic_0001>
module attributes {stable_mosaic.version = 11 : i64} {
  func.func @fno1d_fused_kernel(%arg0: i32, %arg1: memref<2x32xf32, #tpu.memory_space<vmem>>, %arg2: memref<32x128xf32, #tpu.memory_space<vmem>>, %arg3: memref<1x128xf32, #tpu.memory_space<vmem>>, %arg4: memref<128x128xf32, #tpu.memory_space<vmem>>, %arg5: memref<1x128xf32, #tpu.memory_space<vmem>>, %arg6: memref<128x128xf32, #tpu.memory_space<vmem>>, %arg7: memref<1x128xf32, #tpu.memory_space<vmem>>, %arg8: memref<128x2048xf32, #tpu.memory_space<vmem>>, %arg9: memref<1x2048xf32, #tpu.memory_space<vmem>>, %arg10: memref<1x128xf32, #tpu.memory_space<vmem>>, %arg11: memref<1x16xf32, #tpu.memory_space<vmem>>, %arg12: memref<2x16xf32, #tpu.memory_space<vmem>>) attributes {dimension_semantics = [#tpu.dimension_semantics<parallel>], iteration_bounds = array<i64: 1>, scalar_prefetch = 0 : i64, scratch_operands = 0 : i64, tpu.core_type = #tpu.core_type<tc>, window_params = [{transform_indices = @transform_0, window_bounds = array<i64: 2, 32>}, {pipeline_mode = #tpu.pipeline_mode<synchronous>, transform_indices = @transform_1, window_bounds = array<i64: 32, 128>}, {pipeline_mode = #tpu.pipeline_mode<synchronous>, transform_indices = @transform_2, window_bounds = array<i64: 1, 128>}, {pipeline_mode = #tpu.pipeline_mode<synchronous>, transform_indices = @transform_3, window_bounds = array<i64: 128, 128>}, {pipeline_mode = #tpu.pipeline_mode<synchronous>, transform_indices = @transform_4, window_bounds = array<i64: 1, 128>}, {pipeline_mode = #tpu.pipeline_mode<synchronous>, transform_indices = @transform_5, window_bounds = array<i64: 128, 128>}, {pipeline_mode = #tpu.pipeline_mode<synchronous>, transform_indices = @transform_6, window_bounds = array<i64: 1, 128>}, {pipeline_mode = #tpu.pipeline_mode<synchronous>, transform_indices = @transform_7, window_bounds = array<i64: 128, 2048>}, {pipeline_mode = #tpu.pipeline_mode<synchronous>, transform_indices = @transform_8, window_bounds = array<i64: 1, 2048>}, {pipeline_mode = #tpu.pipeline_mode<synchronous>, transform_indices = @transform_9, window_bounds = array<i64: 1, 128>}, {pipeline_mode = #tpu.pipeline_mode<synchronous>, transform_indices = @transform_10, window_bounds = array<i64: 1, 16>}, {transform_indices = @transform_11, window_bounds = array<i64: 2, 16>}]} {
    %c0 = arith.constant 0 : index
    %c0_0 = arith.constant 0 : index
    %0 = vector.load %arg1[%c0, %c0_0] : memref<2x32xf32, #tpu.memory_space<vmem>>, vector<2x32xf32>
    %c0_1 = arith.constant 0 : index
    %c0_2 = arith.constant 0 : index
    %1 = vector.load %arg2[%c0_1, %c0_2] : memref<32x128xf32, #tpu.memory_space<vmem>>, vector<32x128xf32>
    %cst = arith.constant dense<0.000000e+00> : vector<2x128xf32>
    %2 = tpu.matmul %0, %1, %cst {dimension_numbers = #tpu.dot_dimension_numbers<[1], [0], [0], [1], [0, 0, 1, 1], [], []>} : vector<2x32xf32>, vector<32x128xf32>, vector<2x128xf32> -> vector<2x128xf32>
    %c0_3 = arith.constant 0 : index
    %c0_4 = arith.constant 0 : index
    %3 = vector.load %arg3[%c0_3, %c0_4] : memref<1x128xf32, #tpu.memory_space<vmem>>, vector<1x128xf32>
    %4 = vector.broadcast %3 : vector<1x128xf32> to vector<2x128xf32>
    %5 = arith.addf %2, %4 : vector<2x128xf32>
    %cst_5 = arith.constant 5.000000e-01 : f32
    %6 = vector.broadcast %cst_5 : f32 to vector<2x128xf32>
    %7 = arith.mulf %6, %5 : vector<2x128xf32>
    %cst_6 = arith.constant 0.707106769 : f32
    %8 = vector.broadcast %cst_6 : f32 to vector<2x128xf32>
    %9 = arith.mulf %5, %8 : vector<2x128xf32>
    %cst_7 = arith.constant 0.000000e+00 : f32
    %10 = vector.broadcast %cst_7 : f32 to vector<2x128xf32>
    %11 = arith.cmpf oge, %9, %10 : vector<2x128xf32>
    %cst_8 = arith.constant 1.000000e+00 : f32
    %cst_9 = arith.constant -1.000000e+00 : f32
    %12 = vector.broadcast %cst_8 : f32 to vector<2x128xf32>
    %13 = vector.broadcast %cst_9 : f32 to vector<2x128xf32>
    %14 = arith.select %11, %12, %13 : vector<2x128xi1>, vector<2x128xf32>
    %15 = math.absf %9 : vector<2x128xf32>
    %cst_10 = arith.constant 0.327591091 : f32
    %16 = vector.broadcast %cst_10 : f32 to vector<2x128xf32>
    %17 = arith.mulf %16, %15 : vector<2x128xf32>
    %cst_11 = arith.constant 1.000000e+00 : f32
    %18 = vector.broadcast %cst_11 : f32 to vector<2x128xf32>
    %19 = arith.addf %18, %17 : vector<2x128xf32>
    %20 = tpu.reciprocal %19 {approx = true} : vector<2x128xf32> -> vector<2x128xf32>
    %21 = arith.mulf %19, %20 : vector<2x128xf32>
    %cst_12 = arith.constant 2.000000e+00 : f32
    %22 = vector.broadcast %cst_12 : f32 to vector<2x128xf32>
    %23 = arith.subf %22, %21 : vector<2x128xf32>
    %24 = arith.mulf %20, %23 : vector<2x128xf32>
    %cst_13 = arith.constant 1.06140542 : f32
    %25 = vector.broadcast %cst_13 : f32 to vector<2x128xf32>
    %26 = arith.mulf %25, %24 : vector<2x128xf32>
    %cst_14 = arith.constant -1.45315206 : f32
    %27 = vector.broadcast %cst_14 : f32 to vector<2x128xf32>
    %28 = arith.addf %26, %27 : vector<2x128xf32>
    %29 = arith.mulf %28, %24 : vector<2x128xf32>
    %cst_15 = arith.constant 1.42141378 : f32
    %30 = vector.broadcast %cst_15 : f32 to vector<2x128xf32>
    %31 = arith.addf %29, %30 : vector<2x128xf32>
    %32 = arith.mulf %31, %24 : vector<2x128xf32>
    %cst_16 = arith.constant -0.284496725 : f32
    %33 = vector.broadcast %cst_16 : f32 to vector<2x128xf32>
    %34 = arith.addf %32, %33 : vector<2x128xf32>
    %35 = arith.mulf %34, %24 : vector<2x128xf32>
    %cst_17 = arith.constant 0.254829586 : f32
    %36 = vector.broadcast %cst_17 : f32 to vector<2x128xf32>
    %37 = arith.addf %35, %36 : vector<2x128xf32>
    %38 = arith.mulf %37, %24 : vector<2x128xf32>
    %cst_18 = arith.constant 0.000000e+00 : f32
    %39 = vector.broadcast %cst_18 : f32 to vector<2x128xf32>
    %40 = arith.subf %39, %15 : vector<2x128xf32>
    %41 = arith.mulf %40, %15 : vector<2x128xf32>
    %42 = math.exp %41 : vector<2x128xf32>
    %43 = arith.mulf %38, %42 : vector<2x128xf32>
    %cst_19 = arith.constant 1.000000e+00 : f32
    %44 = vector.broadcast %cst_19 : f32 to vector<2x128xf32>
    %45 = arith.subf %44, %43 : vector<2x128xf32>
    %46 = arith.mulf %14, %45 : vector<2x128xf32>
    %cst_20 = arith.constant 1.000000e+00 : f32
    %47 = vector.broadcast %cst_20 : f32 to vector<2x128xf32>
    %48 = arith.addf %47, %46 : vector<2x128xf32>
    %49 = arith.mulf %7, %48 : vector<2x128xf32>
    %c0_21 = arith.constant 0 : index
    %c0_22 = arith.constant 0 : index
    %50 = vector.load %arg4[%c0_21, %c0_22] : memref<128x128xf32, #tpu.memory_space<vmem>>, vector<128x128xf32>
    %cst_23 = arith.constant dense<0.000000e+00> : vector<2x128xf32>
    %51 = tpu.matmul %49, %50, %cst_23 {dimension_numbers = #tpu.dot_dimension_numbers<[1], [0], [0], [1], [0, 0, 1, 1], [], []>} : vector<2x128xf32>, vector<128x128xf32>, vector<2x128xf32> -> vector<2x128xf32>
    %c0_24 = arith.constant 0 : index
    %c0_25 = arith.constant 0 : index
    %52 = vector.load %arg5[%c0_24, %c0_25] : memref<1x128xf32, #tpu.memory_space<vmem>>, vector<1x128xf32>
    %53 = vector.broadcast %52 : vector<1x128xf32> to vector<2x128xf32>
    %54 = arith.addf %51, %53 : vector<2x128xf32>
    %cst_26 = arith.constant 5.000000e-01 : f32
    %55 = vector.broadcast %cst_26 : f32 to vector<2x128xf32>
    %56 = arith.mulf %55, %54 : vector<2x128xf32>
    %cst_27 = arith.constant 0.707106769 : f32
    %57 = vector.broadcast %cst_27 : f32 to vector<2x128xf32>
    %58 = arith.mulf %54, %57 : vector<2x128xf32>
    %cst_28 = arith.constant 0.000000e+00 : f32
    %59 = vector.broadcast %cst_28 : f32 to vector<2x128xf32>
    %60 = arith.cmpf oge, %58, %59 : vector<2x128xf32>
    %cst_29 = arith.constant 1.000000e+00 : f32
    %cst_30 = arith.constant -1.000000e+00 : f32
    %61 = vector.broadcast %cst_29 : f32 to vector<2x128xf32>
    %62 = vector.broadcast %cst_30 : f32 to vector<2x128xf32>
    %63 = arith.select %60, %61, %62 : vector<2x128xi1>, vector<2x128xf32>
    %64 = math.absf %58 : vector<2x128xf32>
    %cst_31 = arith.constant 0.327591091 : f32
    %65 = vector.broadcast %cst_31 : f32 to vector<2x128xf32>
    %66 = arith.mulf %65, %64 : vector<2x128xf32>
    %cst_32 = arith.constant 1.000000e+00 : f32
    %67 = vector.broadcast %cst_32 : f32 to vector<2x128xf32>
    %68 = arith.addf %67, %66 : vector<2x128xf32>
    %69 = tpu.reciprocal %68 {approx = true} : vector<2x128xf32> -> vector<2x128xf32>
    %70 = arith.mulf %68, %69 : vector<2x128xf32>
    %cst_33 = arith.constant 2.000000e+00 : f32
    %71 = vector.broadcast %cst_33 : f32 to vector<2x128xf32>
    %72 = arith.subf %71, %70 : vector<2x128xf32>
    %73 = arith.mulf %69, %72 : vector<2x128xf32>
    %cst_34 = arith.constant 1.06140542 : f32
    %74 = vector.broadcast %cst_34 : f32 to vector<2x128xf32>
    %75 = arith.mulf %74, %73 : vector<2x128xf32>
    %cst_35 = arith.constant -1.45315206 : f32
    %76 = vector.broadcast %cst_35 : f32 to vector<2x128xf32>
    %77 = arith.addf %75, %76 : vector<2x128xf32>
    %78 = arith.mulf %77, %73 : vector<2x128xf32>
    %cst_36 = arith.constant 1.42141378 : f32
    %79 = vector.broadcast %cst_36 : f32 to vector<2x128xf32>
    %80 = arith.addf %78, %79 : vector<2x128xf32>
    %81 = arith.mulf %80, %73 : vector<2x128xf32>
    %cst_37 = arith.constant -0.284496725 : f32
    %82 = vector.broadcast %cst_37 : f32 to vector<2x128xf32>
    %83 = arith.addf %81, %82 : vector<2x128xf32>
    %84 = arith.mulf %83, %73 : vector<2x128xf32>
    %cst_38 = arith.constant 0.254829586 : f32
    %85 = vector.broadcast %cst_38 : f32 to vector<2x128xf32>
    %86 = arith.addf %84, %85 : vector<2x128xf32>
    %87 = arith.mulf %86, %73 : vector<2x128xf32>
    %cst_39 = arith.constant 0.000000e+00 : f32
    %88 = vector.broadcast %cst_39 : f32 to vector<2x128xf32>
    %89 = arith.subf %88, %64 : vector<2x128xf32>
    %90 = arith.mulf %89, %64 : vector<2x128xf32>
    %91 = math.exp %90 : vector<2x128xf32>
    %92 = arith.mulf %87, %91 : vector<2x128xf32>
    %cst_40 = arith.constant 1.000000e+00 : f32
    %93 = vector.broadcast %cst_40 : f32 to vector<2x128xf32>
    %94 = arith.subf %93, %92 : vector<2x128xf32>
    %95 = arith.mulf %63, %94 : vector<2x128xf32>
    %cst_41 = arith.constant 1.000000e+00 : f32
    %96 = vector.broadcast %cst_41 : f32 to vector<2x128xf32>
    %97 = arith.addf %96, %95 : vector<2x128xf32>
    %98 = arith.mulf %56, %97 : vector<2x128xf32>
    %c0_42 = arith.constant 0 : index
    %c0_43 = arith.constant 0 : index
    %99 = vector.load %arg6[%c0_42, %c0_43] : memref<128x128xf32, #tpu.memory_space<vmem>>, vector<128x128xf32>
    %cst_44 = arith.constant dense<0.000000e+00> : vector<2x128xf32>
    %100 = tpu.matmul %98, %99, %cst_44 {dimension_numbers = #tpu.dot_dimension_numbers<[1], [0], [0], [1], [0, 0, 1, 1], [], []>} : vector<2x128xf32>, vector<128x128xf32>, vector<2x128xf32> -> vector<2x128xf32>
    %c0_45 = arith.constant 0 : index
    %c0_46 = arith.constant 0 : index
    %101 = vector.load %arg7[%c0_45, %c0_46] : memref<1x128xf32, #tpu.memory_space<vmem>>, vector<1x128xf32>
    %102 = vector.broadcast %101 : vector<1x128xf32> to vector<2x128xf32>
    %103 = arith.addf %100, %102 : vector<2x128xf32>
    %cst_47 = arith.constant 5.000000e-01 : f32
    %104 = vector.broadcast %cst_47 : f32 to vector<2x128xf32>
    %105 = arith.mulf %104, %103 : vector<2x128xf32>
    %cst_48 = arith.constant 0.707106769 : f32
    %106 = vector.broadcast %cst_48 : f32 to vector<2x128xf32>
    %107 = arith.mulf %103, %106 : vector<2x128xf32>
    %cst_49 = arith.constant 0.000000e+00 : f32
    %108 = vector.broadcast %cst_49 : f32 to vector<2x128xf32>
    %109 = arith.cmpf oge, %107, %108 : vector<2x128xf32>
    %cst_50 = arith.constant 1.000000e+00 : f32
    %cst_51 = arith.constant -1.000000e+00 : f32
    %110 = vector.broadcast %cst_50 : f32 to vector<2x128xf32>
    %111 = vector.broadcast %cst_51 : f32 to vector<2x128xf32>
    %112 = arith.select %109, %110, %111 : vector<2x128xi1>, vector<2x128xf32>
    %113 = math.absf %107 : vector<2x128xf32>
    %cst_52 = arith.constant 0.327591091 : f32
    %114 = vector.broadcast %cst_52 : f32 to vector<2x128xf32>
    %115 = arith.mulf %114, %113 : vector<2x128xf32>
    %cst_53 = arith.constant 1.000000e+00 : f32
    %116 = vector.broadcast %cst_53 : f32 to vector<2x128xf32>
    %117 = arith.addf %116, %115 : vector<2x128xf32>
    %118 = tpu.reciprocal %117 {approx = true} : vector<2x128xf32> -> vector<2x128xf32>
    %119 = arith.mulf %117, %118 : vector<2x128xf32>
    %cst_54 = arith.constant 2.000000e+00 : f32
    %120 = vector.broadcast %cst_54 : f32 to vector<2x128xf32>
    %121 = arith.subf %120, %119 : vector<2x128xf32>
    %122 = arith.mulf %118, %121 : vector<2x128xf32>
    %cst_55 = arith.constant 1.06140542 : f32
    %123 = vector.broadcast %cst_55 : f32 to vector<2x128xf32>
    %124 = arith.mulf %123, %122 : vector<2x128xf32>
    %cst_56 = arith.constant -1.45315206 : f32
    %125 = vector.broadcast %cst_56 : f32 to vector<2x128xf32>
    %126 = arith.addf %124, %125 : vector<2x128xf32>
    %127 = arith.mulf %126, %122 : vector<2x128xf32>
    %cst_57 = arith.constant 1.42141378 : f32
    %128 = vector.broadcast %cst_57 : f32 to vector<2x128xf32>
    %129 = arith.addf %127, %128 : vector<2x128xf32>
    %130 = arith.mulf %129, %122 : vector<2x128xf32>
    %cst_58 = arith.constant -0.284496725 : f32
    %131 = vector.broadcast %cst_58 : f32 to vector<2x128xf32>
    %132 = arith.addf %130, %131 : vector<2x128xf32>
    %133 = arith.mulf %132, %122 : vector<2x128xf32>
    %cst_59 = arith.constant 0.254829586 : f32
    %134 = vector.broadcast %cst_59 : f32 to vector<2x128xf32>
    %135 = arith.addf %133, %134 : vector<2x128xf32>
    %136 = arith.mulf %135, %122 : vector<2x128xf32>
    %cst_60 = arith.constant 0.000000e+00 : f32
    %137 = vector.broadcast %cst_60 : f32 to vector<2x128xf32>
    %138 = arith.subf %137, %113 : vector<2x128xf32>
    %139 = arith.mulf %138, %113 : vector<2x128xf32>
    %140 = math.exp %139 : vector<2x128xf32>
    %141 = arith.mulf %136, %140 : vector<2x128xf32>
    %cst_61 = arith.constant 1.000000e+00 : f32
    %142 = vector.broadcast %cst_61 : f32 to vector<2x128xf32>
    %143 = arith.subf %142, %141 : vector<2x128xf32>
    %144 = arith.mulf %112, %143 : vector<2x128xf32>
    %cst_62 = arith.constant 1.000000e+00 : f32
    %145 = vector.broadcast %cst_62 : f32 to vector<2x128xf32>
    %146 = arith.addf %145, %144 : vector<2x128xf32>
    %147 = arith.mulf %105, %146 : vector<2x128xf32>
    %c0_63 = arith.constant 0 : index
    %c0_64 = arith.constant 0 : index
    %148 = vector.load %arg8[%c0_63, %c0_64] : memref<128x2048xf32, #tpu.memory_space<vmem>>, vector<128x2048xf32>
    %cst_65 = arith.constant dense<0.000000e+00> : vector<2x2048xf32>
    %149 = tpu.matmul %147, %148, %cst_65 {dimension_numbers = #tpu.dot_dimension_numbers<[1], [0], [0], [1], [0, 0, 1, 1], [], []>} : vector<2x128xf32>, vector<128x2048xf32>, vector<2x2048xf32> -> vector<2x2048xf32>
    %c0_66 = arith.constant 0 : index
    %c0_67 = arith.constant 0 : index
    %150 = vector.load %arg9[%c0_66, %c0_67] : memref<1x2048xf32, #tpu.memory_space<vmem>>, vector<1x2048xf32>
    %151 = vector.broadcast %150 : vector<1x2048xf32> to vector<2x2048xf32>
    %152 = arith.addf %149, %151 : vector<2x2048xf32>
    %cst_68 = arith.constant 5.000000e-01 : f32
    %153 = vector.broadcast %cst_68 : f32 to vector<2x2048xf32>
    %154 = arith.mulf %153, %152 : vector<2x2048xf32>
    %cst_69 = arith.constant 0.707106769 : f32
    %155 = vector.broadcast %cst_69 : f32 to vector<2x2048xf32>
    %156 = arith.mulf %152, %155 : vector<2x2048xf32>
    %cst_70 = arith.constant 0.000000e+00 : f32
    %157 = vector.broadcast %cst_70 : f32 to vector<2x2048xf32>
    %158 = arith.cmpf oge, %156, %157 : vector<2x2048xf32>
    %cst_71 = arith.constant 1.000000e+00 : f32
    %cst_72 = arith.constant -1.000000e+00 : f32
    %159 = vector.broadcast %cst_71 : f32 to vector<2x2048xf32>
    %160 = vector.broadcast %cst_72 : f32 to vector<2x2048xf32>
    %161 = arith.select %158, %159, %160 : vector<2x2048xi1>, vector<2x2048xf32>
    %162 = math.absf %156 : vector<2x2048xf32>
    %cst_73 = arith.constant 0.327591091 : f32
    %163 = vector.broadcast %cst_73 : f32 to vector<2x2048xf32>
    %164 = arith.mulf %163, %162 : vector<2x2048xf32>
    %cst_74 = arith.constant 1.000000e+00 : f32
    %165 = vector.broadcast %cst_74 : f32 to vector<2x2048xf32>
    %166 = arith.addf %165, %164 : vector<2x2048xf32>
    %167 = tpu.reciprocal %166 {approx = true} : vector<2x2048xf32> -> vector<2x2048xf32>
    %168 = arith.mulf %166, %167 : vector<2x2048xf32>
    %cst_75 = arith.constant 2.000000e+00 : f32
    %169 = vector.broadcast %cst_75 : f32 to vector<2x2048xf32>
    %170 = arith.subf %169, %168 : vector<2x2048xf32>
    %171 = arith.mulf %167, %170 : vector<2x2048xf32>
    %cst_76 = arith.constant 1.06140542 : f32
    %172 = vector.broadcast %cst_76 : f32 to vector<2x2048xf32>
    %173 = arith.mulf %172, %171 : vector<2x2048xf32>
    %cst_77 = arith.constant -1.45315206 : f32
    %174 = vector.broadcast %cst_77 : f32 to vector<2x2048xf32>
    %175 = arith.addf %173, %174 : vector<2x2048xf32>
    %176 = arith.mulf %175, %171 : vector<2x2048xf32>
    %cst_78 = arith.constant 1.42141378 : f32
    %177 = vector.broadcast %cst_78 : f32 to vector<2x2048xf32>
    %178 = arith.addf %176, %177 : vector<2x2048xf32>
    %179 = arith.mulf %178, %171 : vector<2x2048xf32>
    %cst_79 = arith.constant -0.284496725 : f32
    %180 = vector.broadcast %cst_79 : f32 to vector<2x2048xf32>
    %181 = arith.addf %179, %180 : vector<2x2048xf32>
    %182 = arith.mulf %181, %171 : vector<2x2048xf32>
    %cst_80 = arith.constant 0.254829586 : f32
    %183 = vector.broadcast %cst_80 : f32 to vector<2x2048xf32>
    %184 = arith.addf %182, %183 : vector<2x2048xf32>
    %185 = arith.mulf %184, %171 : vector<2x2048xf32>
    %cst_81 = arith.constant 0.000000e+00 : f32
    %186 = vector.broadcast %cst_81 : f32 to vector<2x2048xf32>
    %187 = arith.subf %186, %162 : vector<2x2048xf32>
    %188 = arith.mulf %187, %162 : vector<2x2048xf32>
    %189 = math.exp %188 : vector<2x2048xf32>
    %190 = arith.mulf %185, %189 : vector<2x2048xf32>
    %cst_82 = arith.constant 1.000000e+00 : f32
    %191 = vector.broadcast %cst_82 : f32 to vector<2x2048xf32>
    %192 = arith.subf %191, %190 : vector<2x2048xf32>
    %193 = arith.mulf %161, %192 : vector<2x2048xf32>
    %cst_83 = arith.constant 1.000000e+00 : f32
    %194 = vector.broadcast %cst_83 : f32 to vector<2x2048xf32>
    %195 = arith.addf %194, %193 : vector<2x2048xf32>
    %196 = arith.mulf %154, %195 : vector<2x2048xf32>
    %c0_84 = arith.constant 0 : index
    %c0_85 = arith.constant 0 : index
    %197 = vector.load %arg10[%c0_84, %c0_85] : memref<1x128xf32, #tpu.memory_space<vmem>>, vector<1x128xf32>
    %c0_86 = arith.constant 0 : index
    %c0_87 = arith.constant 0 : index
    %198 = vector.load %arg11[%c0_86, %c0_87] : memref<1x16xf32, #tpu.memory_space<vmem>>, vector<1x16xf32>
    %199 = vector.extract_strided_slice %196 {offsets = [0, 0], sizes = [2, 128], strides = [1, 1]} : vector<2x2048xf32> to vector<2x128xf32>
    %200 = vector.broadcast %197 : vector<1x128xf32> to vector<2x128xf32>
    %201 = arith.mulf %199, %200 : vector<2x128xf32>
    %cst_88 = arith.constant dense<0.000000e+00> : vector<2xf32>
    %202 = vector.multi_reduction <add>, %201, %cst_88 [1] : vector<2x128xf32> to vector<2xf32>
    %203 = vector.shape_cast %202 : vector<2xf32> to vector<2x1xf32>
    %204 = vector.extract_strided_slice %198 {offsets = [0, 0], sizes = [1, 1], strides = [1, 1]} : vector<1x16xf32> to vector<1x1xf32>
    %205 = vector.broadcast %204 : vector<1x1xf32> to vector<2x1xf32>
    %206 = arith.addf %203, %205 : vector<2x1xf32>
    %c0_89 = arith.constant 0 : index
    %c0_90 = arith.constant 0 : index
    %207 = vector.load %arg12[%c0_89, %c0_90] : memref<2x16xf32, #tpu.memory_space<vmem>>, vector<2x1xf32>
    tpu.vector_store %arg12[%c0_89, %c0_90], %206 {strides = array<i32>} : memref<2x16xf32, #tpu.memory_space<vmem>>, vector<2x1xf32>,
    %208 = vector.extract_strided_slice %196 {offsets = [0, 128], sizes = [2, 128], strides = [1, 1]} : vector<2x2048xf32> to vector<2x128xf32>
    %209 = vector.broadcast %197 : vector<1x128xf32> to vector<2x128xf32>
    %210 = arith.mulf %208, %209 : vector<2x128xf32>
    %cst_91 = arith.constant dense<0.000000e+00> : vector<2xf32>
    %211 = vector.multi_reduction <add>, %210, %cst_91 [1] : vector<2x128xf32> to vector<2xf32>
    %212 = vector.shape_cast %211 : vector<2xf32> to vector<2x1xf32>
    %213 = vector.extract_strided_slice %198 {offsets = [0, 1], sizes = [1, 1], strides = [1, 1]} : vector<1x16xf32> to vector<1x1xf32>
    %214 = vector.broadcast %213 : vector<1x1xf32> to vector<2x1xf32>
    %215 = arith.addf %212, %214 : vector<2x1xf32>
    %c0_92 = arith.constant 0 : index
    %c1 = arith.constant 1 : index
    %216 = vector.load %arg12[%c0_92, %c1] : memref<2x16xf32, #tpu.memory_space<vmem>>, vector<2x1xf32>
    tpu.vector_store %arg12[%c0_92, %c1], %215 {strides = array<i32>} : memref<2x16xf32, #tpu.memory_space<vmem>>, vector<2x1xf32>,
    %217 = vector.extract_strided_slice %196 {offsets = [0, 256], sizes = [2, 128], strides = [1, 1]} : vector<2x2048xf32> to vector<2x128xf32>
    %218 = vector.broadcast %197 : vector<1x128xf32> to vector<2x128xf32>
    %219 = arith.mulf %217, %218 : vector<2x128xf32>
    %cst_93 = arith.constant dense<0.000000e+00> : vector<2xf32>
    %220 = vector.multi_reduction <add>, %219, %cst_93 [1] : vector<2x128xf32> to vector<2xf32>
    %221 = vector.shape_cast %220 : vector<2xf32> to vector<2x1xf32>
    %222 = vector.extract_strided_slice %198 {offsets = [0, 2], sizes = [1, 1], strides = [1, 1]} : vector<1x16xf32> to vector<1x1xf32>
    %223 = vector.broadcast %222 : vector<1x1xf32> to vector<2x1xf32>
    %224 = arith.addf %221, %223 : vector<2x1xf32>
    %c0_94 = arith.constant 0 : index
    %c2 = arith.constant 2 : index
    %225 = vector.load %arg12[%c0_94, %c2] : memref<2x16xf32, #tpu.memory_space<vmem>>, vector<2x1xf32>
    tpu.vector_store %arg12[%c0_94, %c2], %224 {strides = array<i32>} : memref<2x16xf32, #tpu.memory_space<vmem>>, vector<2x1xf32>,
    %226 = vector.extract_strided_slice %196 {offsets = [0, 384], sizes = [2, 128], strides = [1, 1]} : vector<2x2048xf32> to vector<2x128xf32>
    %227 = vector.broadcast %197 : vector<1x128xf32> to vector<2x128xf32>
    %228 = arith.mulf %226, %227 : vector<2x128xf32>
    %cst_95 = arith.constant dense<0.000000e+00> : vector<2xf32>
    %229 = vector.multi_reduction <add>, %228, %cst_95 [1] : vector<2x128xf32> to vector<2xf32>
    %230 = vector.shape_cast %229 : vector<2xf32> to vector<2x1xf32>
    %231 = vector.extract_strided_slice %198 {offsets = [0, 3], sizes = [1, 1], strides = [1, 1]} : vector<1x16xf32> to vector<1x1xf32>
    %232 = vector.broadcast %231 : vector<1x1xf32> to vector<2x1xf32>
    %233 = arith.addf %230, %232 : vector<2x1xf32>
    %c0_96 = arith.constant 0 : index
    %c3 = arith.constant 3 : index
    %234 = vector.load %arg12[%c0_96, %c3] : memref<2x16xf32, #tpu.memory_space<vmem>>, vector<2x1xf32>
    tpu.vector_store %arg12[%c0_96, %c3], %233 {strides = array<i32>} : memref<2x16xf32, #tpu.memory_space<vmem>>, vector<2x1xf32>,
    %235 = vector.extract_strided_slice %196 {offsets = [0, 512], sizes = [2, 128], strides = [1, 1]} : vector<2x2048xf32> to vector<2x128xf32>
    %236 = vector.broadcast %197 : vector<1x128xf32> to vector<2x128xf32>
    %237 = arith.mulf %235, %236 : vector<2x128xf32>
    %cst_97 = arith.constant dense<0.000000e+00> : vector<2xf32>
    %238 = vector.multi_reduction <add>, %237, %cst_97 [1] : vector<2x128xf32> to vector<2xf32>
    %239 = vector.shape_cast %238 : vector<2xf32> to vector<2x1xf32>
    %240 = vector.extract_strided_slice %198 {offsets = [0, 4], sizes = [1, 1], strides = [1, 1]} : vector<1x16xf32> to vector<1x1xf32>
    %241 = vector.broadcast %240 : vector<1x1xf32> to vector<2x1xf32>
    %242 = arith.addf %239, %241 : vector<2x1xf32>
    %c0_98 = arith.constant 0 : index
    %c4 = arith.constant 4 : index
    %243 = vector.load %arg12[%c0_98, %c4] : memref<2x16xf32, #tpu.memory_space<vmem>>, vector<2x1xf32>
    tpu.vector_store %arg12[%c0_98, %c4], %242 {strides = array<i32>} : memref<2x16xf32, #tpu.memory_space<vmem>>, vector<2x1xf32>,
    %244 = vector.extract_strided_slice %196 {offsets = [0, 640], sizes = [2, 128], strides = [1, 1]} : vector<2x2048xf32> to vector<2x128xf32>
    %245 = vector.broadcast %197 : vector<1x128xf32> to vector<2x128xf32>
    %246 = arith.mulf %244, %245 : vector<2x128xf32>
    %cst_99 = arith.constant dense<0.000000e+00> : vector<2xf32>
    %247 = vector.multi_reduction <add>, %246, %cst_99 [1] : vector<2x128xf32> to vector<2xf32>
    %248 = vector.shape_cast %247 : vector<2xf32> to vector<2x1xf32>
    %249 = vector.extract_strided_slice %198 {offsets = [0, 5], sizes = [1, 1], strides = [1, 1]} : vector<1x16xf32> to vector<1x1xf32>
    %250 = vector.broadcast %249 : vector<1x1xf32> to vector<2x1xf32>
    %251 = arith.addf %248, %250 : vector<2x1xf32>
    %c0_100 = arith.constant 0 : index
    %c5 = arith.constant 5 : index
    %252 = vector.load %arg12[%c0_100, %c5] : memref<2x16xf32, #tpu.memory_space<vmem>>, vector<2x1xf32>
    tpu.vector_store %arg12[%c0_100, %c5], %251 {strides = array<i32>} : memref<2x16xf32, #tpu.memory_space<vmem>>, vector<2x1xf32>,
    %253 = vector.extract_strided_slice %196 {offsets = [0, 768], sizes = [2, 128], strides = [1, 1]} : vector<2x2048xf32> to vector<2x128xf32>
    %254 = vector.broadcast %197 : vector<1x128xf32> to vector<2x128xf32>
    %255 = arith.mulf %253, %254 : vector<2x128xf32>
    %cst_101 = arith.constant dense<0.000000e+00> : vector<2xf32>
    %256 = vector.multi_reduction <add>, %255, %cst_101 [1] : vector<2x128xf32> to vector<2xf32>
    %257 = vector.shape_cast %256 : vector<2xf32> to vector<2x1xf32>
    %258 = vector.extract_strided_slice %198 {offsets = [0, 6], sizes = [1, 1], strides = [1, 1]} : vector<1x16xf32> to vector<1x1xf32>
    %259 = vector.broadcast %258 : vector<1x1xf32> to vector<2x1xf32>
    %260 = arith.addf %257, %259 : vector<2x1xf32>
    %c0_102 = arith.constant 0 : index
    %c6 = arith.constant 6 : index
    %261 = vector.load %arg12[%c0_102, %c6] : memref<2x16xf32, #tpu.memory_space<vmem>>, vector<2x1xf32>
    tpu.vector_store %arg12[%c0_102, %c6], %260 {strides = array<i32>} : memref<2x16xf32, #tpu.memory_space<vmem>>, vector<2x1xf32>,
    %262 = vector.extract_strided_slice %196 {offsets = [0, 896], sizes = [2, 128], strides = [1, 1]} : vector<2x2048xf32> to vector<2x128xf32>
    %263 = vector.broadcast %197 : vector<1x128xf32> to vector<2x128xf32>
    %264 = arith.mulf %262, %263 : vector<2x128xf32>
    %cst_103 = arith.constant dense<0.000000e+00> : vector<2xf32>
    %265 = vector.multi_reduction <add>, %264, %cst_103 [1] : vector<2x128xf32> to vector<2xf32>
    %266 = vector.shape_cast %265 : vector<2xf32> to vector<2x1xf32>
    %267 = vector.extract_strided_slice %198 {offsets = [0, 7], sizes = [1, 1], strides = [1, 1]} : vector<1x16xf32> to vector<1x1xf32>
    %268 = vector.broadcast %267 : vector<1x1xf32> to vector<2x1xf32>
    %269 = arith.addf %266, %268 : vector<2x1xf32>
    %c0_104 = arith.constant 0 : index
    %c7 = arith.constant 7 : index
    %270 = vector.load %arg12[%c0_104, %c7] : memref<2x16xf32, #tpu.memory_space<vmem>>, vector<2x1xf32>
    tpu.vector_store %arg12[%c0_104, %c7], %269 {strides = array<i32>} : memref<2x16xf32, #tpu.memory_space<vmem>>, vector<2x1xf32>,
    %271 = vector.extract_strided_slice %196 {offsets = [0, 1024], sizes = [2, 128], strides = [1, 1]} : vector<2x2048xf32> to vector<2x128xf32>
    %272 = vector.broadcast %197 : vector<1x128xf32> to vector<2x128xf32>
    %273 = arith.mulf %271, %272 : vector<2x128xf32>
    %cst_105 = arith.constant dense<0.000000e+00> : vector<2xf32>
    %274 = vector.multi_reduction <add>, %273, %cst_105 [1] : vector<2x128xf32> to vector<2xf32>
    %275 = vector.shape_cast %274 : vector<2xf32> to vector<2x1xf32>
    %276 = vector.extract_strided_slice %198 {offsets = [0, 8], sizes = [1, 1], strides = [1, 1]} : vector<1x16xf32> to vector<1x1xf32>
    %277 = vector.broadcast %276 : vector<1x1xf32> to vector<2x1xf32>
    %278 = arith.addf %275, %277 : vector<2x1xf32>
    %c0_106 = arith.constant 0 : index
    %c8 = arith.constant 8 : index
    %279 = vector.load %arg12[%c0_106, %c8] : memref<2x16xf32, #tpu.memory_space<vmem>>, vector<2x1xf32>
    tpu.vector_store %arg12[%c0_106, %c8], %278 {strides = array<i32>} : memref<2x16xf32, #tpu.memory_space<vmem>>, vector<2x1xf32>,
    %280 = vector.extract_strided_slice %196 {offsets = [0, 1152], sizes = [2, 128], strides = [1, 1]} : vector<2x2048xf32> to vector<2x128xf32>
    %281 = vector.broadcast %197 : vector<1x128xf32> to vector<2x128xf32>
    %282 = arith.mulf %280, %281 : vector<2x128xf32>
    %cst_107 = arith.constant dense<0.000000e+00> : vector<2xf32>
    %283 = vector.multi_reduction <add>, %282, %cst_107 [1] : vector<2x128xf32> to vector<2xf32>
    %284 = vector.shape_cast %283 : vector<2xf32> to vector<2x1xf32>
    %285 = vector.extract_strided_slice %198 {offsets = [0, 9], sizes = [1, 1], strides = [1, 1]} : vector<1x16xf32> to vector<1x1xf32>
    %286 = vector.broadcast %285 : vector<1x1xf32> to vector<2x1xf32>
    %287 = arith.addf %284, %286 : vector<2x1xf32>
    %c0_108 = arith.constant 0 : index
    %c9 = arith.constant 9 : index
    %288 = vector.load %arg12[%c0_108, %c9] : memref<2x16xf32, #tpu.memory_space<vmem>>, vector<2x1xf32>
    tpu.vector_store %arg12[%c0_108, %c9], %287 {strides = array<i32>} : memref<2x16xf32, #tpu.memory_space<vmem>>, vector<2x1xf32>,
    %289 = vector.extract_strided_slice %196 {offsets = [0, 1280], sizes = [2, 128], strides = [1, 1]} : vector<2x2048xf32> to vector<2x128xf32>
    %290 = vector.broadcast %197 : vector<1x128xf32> to vector<2x128xf32>
    %291 = arith.mulf %289, %290 : vector<2x128xf32>
    %cst_109 = arith.constant dense<0.000000e+00> : vector<2xf32>
    %292 = vector.multi_reduction <add>, %291, %cst_109 [1] : vector<2x128xf32> to vector<2xf32>
    %293 = vector.shape_cast %292 : vector<2xf32> to vector<2x1xf32>
    %294 = vector.extract_strided_slice %198 {offsets = [0, 10], sizes = [1, 1], strides = [1, 1]} : vector<1x16xf32> to vector<1x1xf32>
    %295 = vector.broadcast %294 : vector<1x1xf32> to vector<2x1xf32>
    %296 = arith.addf %293, %295 : vector<2x1xf32>
    %c0_110 = arith.constant 0 : index
    %c10 = arith.constant 10 : index
    %297 = vector.load %arg12[%c0_110, %c10] : memref<2x16xf32, #tpu.memory_space<vmem>>, vector<2x1xf32>
    tpu.vector_store %arg12[%c0_110, %c10], %296 {strides = array<i32>} : memref<2x16xf32, #tpu.memory_space<vmem>>, vector<2x1xf32>,
    %298 = vector.extract_strided_slice %196 {offsets = [0, 1408], sizes = [2, 128], strides = [1, 1]} : vector<2x2048xf32> to vector<2x128xf32>
    %299 = vector.broadcast %197 : vector<1x128xf32> to vector<2x128xf32>
    %300 = arith.mulf %298, %299 : vector<2x128xf32>
    %cst_111 = arith.constant dense<0.000000e+00> : vector<2xf32>
    %301 = vector.multi_reduction <add>, %300, %cst_111 [1] : vector<2x128xf32> to vector<2xf32>
    %302 = vector.shape_cast %301 : vector<2xf32> to vector<2x1xf32>
    %303 = vector.extract_strided_slice %198 {offsets = [0, 11], sizes = [1, 1], strides = [1, 1]} : vector<1x16xf32> to vector<1x1xf32>
    %304 = vector.broadcast %303 : vector<1x1xf32> to vector<2x1xf32>
    %305 = arith.addf %302, %304 : vector<2x1xf32>
    %c0_112 = arith.constant 0 : index
    %c11 = arith.constant 11 : index
    %306 = vector.load %arg12[%c0_112, %c11] : memref<2x16xf32, #tpu.memory_space<vmem>>, vector<2x1xf32>
    tpu.vector_store %arg12[%c0_112, %c11], %305 {strides = array<i32>} : memref<2x16xf32, #tpu.memory_space<vmem>>, vector<2x1xf32>,
    %307 = vector.extract_strided_slice %196 {offsets = [0, 1536], sizes = [2, 128], strides = [1, 1]} : vector<2x2048xf32> to vector<2x128xf32>
    %308 = vector.broadcast %197 : vector<1x128xf32> to vector<2x128xf32>
    %309 = arith.mulf %307, %308 : vector<2x128xf32>
    %cst_113 = arith.constant dense<0.000000e+00> : vector<2xf32>
    %310 = vector.multi_reduction <add>, %309, %cst_113 [1] : vector<2x128xf32> to vector<2xf32>
    %311 = vector.shape_cast %310 : vector<2xf32> to vector<2x1xf32>
    %312 = vector.extract_strided_slice %198 {offsets = [0, 12], sizes = [1, 1], strides = [1, 1]} : vector<1x16xf32> to vector<1x1xf32>
    %313 = vector.broadcast %312 : vector<1x1xf32> to vector<2x1xf32>
    %314 = arith.addf %311, %313 : vector<2x1xf32>
    %c0_114 = arith.constant 0 : index
    %c12 = arith.constant 12 : index
    %315 = vector.load %arg12[%c0_114, %c12] : memref<2x16xf32, #tpu.memory_space<vmem>>, vector<2x1xf32>
    tpu.vector_store %arg12[%c0_114, %c12], %314 {strides = array<i32>} : memref<2x16xf32, #tpu.memory_space<vmem>>, vector<2x1xf32>,
    %316 = vector.extract_strided_slice %196 {offsets = [0, 1664], sizes = [2, 128], strides = [1, 1]} : vector<2x2048xf32> to vector<2x128xf32>
    %317 = vector.broadcast %197 : vector<1x128xf32> to vector<2x128xf32>
    %318 = arith.mulf %316, %317 : vector<2x128xf32>
    %cst_115 = arith.constant dense<0.000000e+00> : vector<2xf32>
    %319 = vector.multi_reduction <add>, %318, %cst_115 [1] : vector<2x128xf32> to vector<2xf32>
    %320 = vector.shape_cast %319 : vector<2xf32> to vector<2x1xf32>
    %321 = vector.extract_strided_slice %198 {offsets = [0, 13], sizes = [1, 1], strides = [1, 1]} : vector<1x16xf32> to vector<1x1xf32>
    %322 = vector.broadcast %321 : vector<1x1xf32> to vector<2x1xf32>
    %323 = arith.addf %320, %322 : vector<2x1xf32>
    %c0_116 = arith.constant 0 : index
    %c13 = arith.constant 13 : index
    %324 = vector.load %arg12[%c0_116, %c13] : memref<2x16xf32, #tpu.memory_space<vmem>>, vector<2x1xf32>
    tpu.vector_store %arg12[%c0_116, %c13], %323 {strides = array<i32>} : memref<2x16xf32, #tpu.memory_space<vmem>>, vector<2x1xf32>,
    %325 = vector.extract_strided_slice %196 {offsets = [0, 1792], sizes = [2, 128], strides = [1, 1]} : vector<2x2048xf32> to vector<2x128xf32>
    %326 = vector.broadcast %197 : vector<1x128xf32> to vector<2x128xf32>
    %327 = arith.mulf %325, %326 : vector<2x128xf32>
    %cst_117 = arith.constant dense<0.000000e+00> : vector<2xf32>
    %328 = vector.multi_reduction <add>, %327, %cst_117 [1] : vector<2x128xf32> to vector<2xf32>
    %329 = vector.shape_cast %328 : vector<2xf32> to vector<2x1xf32>
    %330 = vector.extract_strided_slice %198 {offsets = [0, 14], sizes = [1, 1], strides = [1, 1]} : vector<1x16xf32> to vector<1x1xf32>
    %331 = vector.broadcast %330 : vector<1x1xf32> to vector<2x1xf32>
    %332 = arith.addf %329, %331 : vector<2x1xf32>
    %c0_118 = arith.constant 0 : index
    %c14 = arith.constant 14 : index
    %333 = vector.load %arg12[%c0_118, %c14] : memref<2x16xf32, #tpu.memory_space<vmem>>, vector<2x1xf32>
    tpu.vector_store %arg12[%c0_118, %c14], %332 {strides = array<i32>} : memref<2x16xf32, #tpu.memory_space<vmem>>, vector<2x1xf32>,
    %334 = vector.extract_strided_slice %196 {offsets = [0, 1920], sizes = [2, 128], strides = [1, 1]} : vector<2x2048xf32> to vector<2x128xf32>
    %335 = vector.broadcast %197 : vector<1x128xf32> to vector<2x128xf32>
    %336 = arith.mulf %334, %335 : vector<2x128xf32>
    %cst_119 = arith.constant dense<0.000000e+00> : vector<2xf32>
    %337 = vector.multi_reduction <add>, %336, %cst_119 [1] : vector<2x128xf32> to vector<2xf32>
    %338 = vector.shape_cast %337 : vector<2xf32> to vector<2x1xf32>
    %339 = vector.extract_strided_slice %198 {offsets = [0, 15], sizes = [1, 1], strides = [1, 1]} : vector<1x16xf32> to vector<1x1xf32>
    %340 = vector.broadcast %339 : vector<1x1xf32> to vector<2x1xf32>
    %341 = arith.addf %338, %340 : vector<2x1xf32>
    %c0_120 = arith.constant 0 : index
    %c15 = arith.constant 15 : index
    %342 = vector.load %arg12[%c0_120, %c15] : memref<2x16xf32, #tpu.memory_space<vmem>>, vector<2x1xf32>
    tpu.vector_store %arg12[%c0_120, %c15], %341 {strides = array<i32>} : memref<2x16xf32, #tpu.memory_space<vmem>>, vector<2x1xf32>,
    return
  }
  func.func @transform_0(%arg0: i32) -> (i32, i32) {
    %c0_i32 = arith.constant 0 : i32
    %c0_i32_0 = arith.constant 0 : i32
    return %arg0, %c0_i32 : i32, i32
  }
  func.func @transform_1(%arg0: i32) -> (i32, i32) {
    %c0_i32 = arith.constant 0 : i32
    %c0_i32_0 = arith.constant 0 : i32
    %c0_i32_1 = arith.constant 0 : i32
    return %c0_i32, %c0_i32_0 : i32, i32
  }
  func.func @transform_2(%arg0: i32) -> (i32, i32) {
    %c0_i32 = arith.constant 0 : i32
    %c0_i32_0 = arith.constant 0 : i32
    %c0_i32_1 = arith.constant 0 : i32
    return %c0_i32, %c0_i32_0 : i32, i32
  }
  func.func @transform_3(%arg0: i32) -> (i32, i32) {
    %c0_i32 = arith.constant 0 : i32
    %c0_i32_0 = arith.constant 0 : i32
    %c0_i32_1 = arith.constant 0 : i32
    return %c0_i32, %c0_i32_0 : i32, i32
  }
  func.func @transform_4(%arg0: i32) -> (i32, i32) {
    %c0_i32 = arith.constant 0 : i32
    %c0_i32_0 = arith.constant 0 : i32
    %c0_i32_1 = arith.constant 0 : i32
    return %c0_i32, %c0_i32_0 : i32, i32
  }
  func.func @transform_5(%arg0: i32) -> (i32, i32) {
    %c0_i32 = arith.constant 0 : i32
    %c0_i32_0 = arith.constant 0 : i32
    %c0_i32_1 = arith.constant 0 : i32
    return %c0_i32, %c0_i32_0 : i32, i32
  }
  func.func @transform_6(%arg0: i32) -> (i32, i32) {
    %c0_i32 = arith.constant 0 : i32
    %c0_i32_0 = arith.constant 0 : i32
    %c0_i32_1 = arith.constant 0 : i32
    return %c0_i32, %c0_i32_0 : i32, i32
  }
  func.func @transform_7(%arg0: i32) -> (i32, i32) {
    %c0_i32 = arith.constant 0 : i32
    %c0_i32_0 = arith.constant 0 : i32
    %c0_i32_1 = arith.constant 0 : i32
    return %c0_i32, %c0_i32_0 : i32, i32
  }
  func.func @transform_8(%arg0: i32) -> (i32, i32) {
    %c0_i32 = arith.constant 0 : i32
    %c0_i32_0 = arith.constant 0 : i32
    %c0_i32_1 = arith.constant 0 : i32
    return %c0_i32, %c0_i32_0 : i32, i32
  }
  func.func @transform_9(%arg0: i32) -> (i32, i32) {
    %c0_i32 = arith.constant 0 : i32
    %c0_i32_0 = arith.constant 0 : i32
    %c0_i32_1 = arith.constant 0 : i32
    return %c0_i32, %c0_i32_0 : i32, i32
  }
  func.func @transform_10(%arg0: i32) -> (i32, i32) {
    %c0_i32 = arith.constant 0 : i32
    %c0_i32_0 = arith.constant 0 : i32
    %c0_i32_1 = arith.constant 0 : i32
    return %c0_i32, %c0_i32_0 : i32, i32
  }
  func.func @transform_11(%arg0: i32) -> (i32, i32) {
    %c0_i32 = arith.constant 0 : i32
    %c0_i32_0 = arith.constant 0 : i32
    return %arg0, %c0_i32 : i32, i32
  }
}

</mosaic_0001>

<llo_original>
// kernel: fno1d_forward.1
$region0: #{fno1d_forward.1}
  #allocation0 [shape = 'u32[]', space=smem, size = 0x4, offset = 0x4, fixed_abs, tag = 'smem constant byte address 0x4 - core index']
  #allocation1 [shape = 'u32[144,128]{1,0:T(1,128)}', space=vmem, size = 0x12000, scoped, tag = 'internal scratch']
  %s0 = inlined_call_operand.vmem [shape: f32[2,32], index: 0, kind: input, shape index: {}]
  %s1 = inlined_call_operand.vmem [shape: f32[32,128], index: 1, kind: input, shape index: {}]
  %s2 = inlined_call_operand.vmem [shape: f32[1,128], index: 2, kind: input, shape index: {}]
  %s3 = inlined_call_operand.hbm [shape: f32[128,128], index: 3, kind: input, shape index: {}]
  %s4 = inlined_call_operand.vmem [shape: f32[1,128], index: 4, kind: input, shape index: {}]
  %s5 = inlined_call_operand.hbm [shape: f32[128,128], index: 5, kind: input, shape index: {}]
  %s6 = inlined_call_operand.vmem [shape: f32[1,128], index: 6, kind: input, shape index: {}]
  %s7 = inlined_call_operand.hbm [shape: f32[128,2048], index: 7, kind: input, shape index: {}]
  %s8 = inlined_call_operand.vmem [shape: f32[1,2048], index: 8, kind: input, shape index: {}]
  %s9 = inlined_call_operand.vmem [shape: f32[1,128], index: 9, kind: input, shape index: {}]
  %s10 = inlined_call_operand.vmem [shape: f32[1,16], index: 10, kind: input, shape index: {}]
  %s11 = inlined_call_operand.hbm [shape: f32[2,16], index: 11, kind: output, shape index: {}]
  %s12 = sld [smem:[#allocation0]]
  $region66: #{fno1d_forward.1} parent=0
    _
  %s14 = ssub.s32 1, %s12
  %s15 = scalar_select 0, %s14, %s12
  $region1: #{fno1d_forward.1} parent=0
    #allocation2 [shape = 'u8[65536]{0}', space=vmem, size = 0x10000, scoped, tag = 'input window, operand 3, single buffered']
    #allocation3 [shape = 's32[1]{0}', space=sflag, size = 0x4, scoped, tag = 'scoped memory for fno1d_forward.1']
    #allocation4 [shape = 's32[1]{0}', space=sflag, size = 0x4, scoped, tag = 'scoped memory for fno1d_forward.1']
    #allocation5 [shape = 'u8[65536]{0}', space=vmem, size = 0x10000, scoped, tag = 'input window, operand 5, single buffered']
    #allocation6 [shape = 's32[1]{0}', space=sflag, size = 0x4, scoped, tag = 'scoped memory for fno1d_forward.1']
    #allocation7 [shape = 'u8[1048576]{0}', space=vmem, size = 0x100000, scoped, tag = 'input window, operand 7, single buffered']
    #allocation8 [shape = 'u8[1024]{0}', space=vmem, size = 0x400, scoped, tag = 'output window, operand 0, single buffered']
    %16 = vsyncpa [#allocation3], 0
    %17 = vsyncpa [#allocation6], 0
    %18 = vsyncpa [#allocation4], 0
    // Predicated region
    $region2: #{fno1d_forward.1} parent=1 // pred_check
      _
    $region3: #{fno1d_forward.1} parent=1 // pred_check_branch
      %20 = sbr.rel (0) target = $region5
    $region4: #{fno1d_forward.1} parent=1 // pred_region
      _
    $region5: #{fno1d_forward.1} parent=1 // pred_fallthru
      _
    // Predicated region
    $region6: #{fno1d_forward.1} parent=1 // pred_check
      _
    $region7: #{fno1d_forward.1} parent=1 // pred_check_branch
      %22 = sbr.rel (0) target = $region9
    $region8: #{fno1d_forward.1} parent=1 // pred_region
      _
    $region9: #{fno1d_forward.1} parent=1 // pred_fallthru
      _
    // Predicated region
    $region10: #{fno1d_forward.1} parent=1 // pred_check
      _
    $region11: #{fno1d_forward.1} parent=1 // pred_check_branch
      %24 = sbr.rel (0) target = $region13
    $region12: #{fno1d_forward.1} parent=1 // pred_region
      _
    $region13: #{fno1d_forward.1} parent=1 // pred_fallthru
      _
    // Predicated region
    $region14: #{fno1d_forward.1} parent=1 // pred_check
      _
    $region15: #{fno1d_forward.1} parent=1 // pred_check_branch
      %26 = sbr.rel (0) target = $region17
    $region16: #{fno1d_forward.1} parent=1 // pred_region
      %s28 = ssub.s32 2048, 2048
      %29 = vsyncadd [#allocation3], %s28
      %s30 = sshll.u32 [#allocation2], 4
      %s31 = int_to_ptr.vmem [resolvable:$true] %s30
      %36 = dma.hbm_to_vmem [thread:$0]  %s3, 2048, %s31, [#allocation3], 128, 128, 8
    $region17: #{fno1d_forward.1} parent=1 // pred_fallthru
      _
    // Predicated region
    $region18: #{fno1d_forward.1} parent=1 // pred_check
      _
    $region19: #{fno1d_forward.1} parent=1 // pred_check_branch
      %38 = sbr.rel (0) target = $region21
    $region20: #{fno1d_forward.1} parent=1 // pred_region
      _
    $region21: #{fno1d_forward.1} parent=1 // pred_fallthru
      _
    // Predicated region
    $region22: #{fno1d_forward.1} parent=1 // pred_check
      _
    $region23: #{fno1d_forward.1} parent=1 // pred_check_branch
      %40 = sbr.rel (0) target = $region25
    $region24: #{fno1d_forward.1} parent=1 // pred_region
      %s42 = ssub.s32 2048, 2048
      %43 = vsyncadd [#allocation6], %s42
      %s44 = sshll.u32 [#allocation5], 4
      %s45 = int_to_ptr.vmem [resolvable:$true] %s44
      %50 = dma.hbm_to_vmem [thread:$0]  %s5, 2048, %s45, [#allocation6], 128, 128, 8
    $region25: #{fno1d_forward.1} parent=1 // pred_fallthru
      _
    // Predicated region
    $region26: #{fno1d_forward.1} parent=1 // pred_check
      _
    $region27: #{fno1d_forward.1} parent=1 // pred_check_branch
      %52 = sbr.rel (0) target = $region29
    $region28: #{fno1d_forward.1} parent=1 // pred_region
      _
    $region29: #{fno1d_forward.1} parent=1 // pred_fallthru
      _
    // Predicated region
    $region30: #{fno1d_forward.1} parent=1 // pred_check
      _
    $region31: #{fno1d_forward.1} parent=1 // pred_check_branch
      %54 = sbr.rel (0) target = $region33
    $region32: #{fno1d_forward.1} parent=1 // pred_region
      %s56 = ssub.s32 32768, 32768
      %57 = vsyncadd [#allocation6], %s56
      %s58 = sshll.u32 [#allocation7], 4
      %s59 = int_to_ptr.vmem [resolvable:$true] %s58
      %64 = dma.hbm_to_vmem [thread:$0]  %s7, 32768, %s59, [#allocation6], 2048, 2048, 128
    $region33: #{fno1d_forward.1} parent=1 // pred_fallthru
      _
    // Predicated region
    $region34: #{fno1d_forward.1} parent=1 // pred_check
      _
    $region35: #{fno1d_forward.1} parent=1 // pred_check_branch
      %66 = sbr.rel (0) target = $region37
    $region36: #{fno1d_forward.1} parent=1 // pred_region
      _
    $region37: #{fno1d_forward.1} parent=1 // pred_fallthru
      _
    // Predicated region
    $region38: #{fno1d_forward.1} parent=1 // pred_check
      _
    $region39: #{fno1d_forward.1} parent=1 // pred_check_branch
      %68 = sbr.rel (0) target = $region41
    $region40: #{fno1d_forward.1} parent=1 // pred_region
      _
    $region41: #{fno1d_forward.1} parent=1 // pred_fallthru
      _
    // Predicated region
    $region42: #{fno1d_forward.1} parent=1 // pred_check
      _
    $region43: #{fno1d_forward.1} parent=1 // pred_check_branch
      %70 = sbr.rel (0) target = $region45
    $region44: #{fno1d_forward.1} parent=1 // pred_region
      _
    $region45: #{fno1d_forward.1} parent=1 // pred_fallthru
      _
    // Predicated region
    $region46: #{fno1d_forward.1} parent=1 // pred_check
      _
    $region47: #{fno1d_forward.1} parent=1 // pred_check_branch
      %72 = sbr.rel (0) target = $region49
    $region48: #{fno1d_forward.1} parent=1 // pred_region
      %73 = dma.done [#allocation3], 2048
    $region49: #{fno1d_forward.1} parent=1 // pred_fallthru
      _
    // Predicated region
    $region50: #{fno1d_forward.1} parent=1 // pred_check
      _
    $region51: #{fno1d_forward.1} parent=1 // pred_check_branch
      %75 = sbr.rel (0) target = $region53
    $region52: #{fno1d_forward.1} parent=1 // pred_region
      %76 = dma.done [#allocation6], 2048
    $region53: #{fno1d_forward.1} parent=1 // pred_fallthru
      _
    // Predicated region
    $region54: #{fno1d_forward.1} parent=1 // pred_check
      _
    $region55: #{fno1d_forward.1} parent=1 // pred_check_branch
      %78 = sbr.rel (0) target = $region57
    $region56: #{fno1d_forward.1} parent=1 // pred_region
      %79 = dma.done [#allocation6], 32768
    $region57: #{fno1d_forward.1} parent=1 // pred_fallthru
      _
    %v80 = vld [vmem:[%s0] sm:$0x3]
    %v81 = vld [vmem:[%s1] sm:$0xff]
    %v82 = vld [vmem:[%s1 + $0x8] sm:$0xff]
    %v83 = vld [vmem:[%s1 + $0x10] sm:$0xff]
    %v84 = vld [vmem:[%s1 + $0x18] sm:$0xff]
    %v85 = vld [vmem:[%s2] sm:$0x1]
    %v87 = vlaneseq
    %v88 = vshrl.u32 %v87, 7
    %v89 = vsub.s32 0, %v88
    %v90 = vrot.slane %v85, %v89
    %vm92 = vcmask 261120
    %v94 = vsel %vm92, %v80, 0
    %96 = vmatprep.subr.mxu0 0.0
    %97 = vmatpush1.msra.mxu0 %v81
    %98 = vmatprep.subr.mxu0 0.0
    %99 = vmatpush1.msra.mxu0 %v82
    %100 = vmatprep.subr.mxu0 0.0
    %101 = vmatpush1.msra.mxu0 %v83
    %102 = vmatprep.subr.mxu0 0.0
    %103 = vmatpush1.msra.mxu0 %v84
    %104 = vmatprep.subr.mxu0 0.0
    %105 = vmatpush1.msra.mxu0 0.0
    %106 = vmatprep.subr.mxu0 0.0
    %107 = vmatpush1.msra.mxu0 0.0
    %108 = vmatprep.subr.mxu0 0.0
    %109 = vmatpush1.msra.mxu0 0.0
    %110 = vmatprep.subr.mxu0 0.0
    %111 = vmatpush1.msra.mxu0 0.0
    %112 = vmatprep.subr.mxu0 0.0
    %113 = vmatpush1.msra.mxu0 0.0
    %114 = vmatprep.subr.mxu0 0.0
    %115 = vmatpush1.msra.mxu0 0.0
    %116 = vmatprep.subr.mxu0 0.0
    %117 = vmatpush1.msra.mxu0 0.0
    %118 = vmatprep.subr.mxu0 0.0
    %119 = vmatpush1.msra.mxu0 0.0
    %120 = vmatprep.subr.mxu0 0.0
    %121 = vmatpush1.msra.mxu0 0.0
    %122 = vmatprep.subr.mxu0 0.0
    %123 = vmatpush1.msra.mxu0 0.0
    %124 = vmatprep.subr.mxu0 0.0
    %125 = vmatpush1.msra.mxu0 0.0
    %126 = vmatprep.subr.mxu0 0.0
    %127 = vmatpush1.msra.mxu0 0.0
    %128 = vmatprep.subr.mxu0 0.0
    %129 = vmatpush1.msra.mxu0 0.0
    %130 = vmatprep.subr.mxu0 0.0
    %131 = vmatpush1.msra.mxu0 0.0
    %132 = vmatprep.subr.mxu0 0.0
    %133 = vmatpush1.msra.mxu0 0.0
    %134 = vmatprep.subr.mxu0 0.0
    %135 = vmatpush1.msra.mxu0 0.0
    %136 = vmatprep.subr.mxu0 0.0
    %137 = vmatpush1.msra.mxu0 0.0
    %138 = vmatprep.subr.mxu0 0.0
    %139 = vmatpush1.msra.mxu0 0.0
    %140 = vmatprep.subr.mxu0 0.0
    %141 = vmatpush1.msra.mxu0 0.0
    %142 = vmatprep.subr.mxu0 0.0
    %143 = vmatpush1.msra.mxu0 0.0
    %144 = vmatprep.subr.mxu0 0.0
    %145 = vmatpush1.msra.mxu0 0.0
    %146 = vmatprep.subr.mxu0 0.0
    %147 = vmatpush1.msra.mxu0 0.0
    %148 = vmatprep.subr.mxu0 0.0
    %149 = vmatpush1.msra.mxu0 0.0
    %150 = vmatprep.subr.mxu0 0.0
    %151 = vmatpush1.msra.mxu0 0.0
    %152 = vmatprep.subr.mxu0 0.0
    %153 = vmatpush1.msra.mxu0 0.0
    %154 = vmatprep.subr.mxu0 0.0
    %155 = vmatpush1.msra.mxu0 0.0
    %156 = vmatprep.subr.mxu0 0.0
    %157 = vmatpush1.msra.mxu0 0.0
    %158 = vmatprep.subr.mxu0 0.0
    %159 = vmatpush1.msra.mxu0 0.0
    %160 = vmatprep.mubr.f32.mxu0 0.0
    %161 = vmatmul.mubr.f32.gmra.mrb[0].mxu0 %v94
    %v162 = vpop.f32.mrb[0].mxu0
    %v163 = vadd.f32 %v90, %v162
    %v164 = vpop.f32.mrb[0].mxu0
    %165 = vdwg.mxu0
    %v166 = vmul.f32 %v163, 0.5
    %v167 = vmul.f32 %v163, 0.70710677
    %vm168 = vcmp.ge.f32.partialorder %v167, 0.0
    %v169 = vsel %vm168, 1.0, -1.0
    %v170 = vand.u32 2147483647, %v167
    %v171 = vmul.f32 %v170, 0.3275911
    %v172 = vadd.f32 %v171, 1.0
    %v173 = vrcp.pop %v172
    %v174 = vmul.f32 %v172, %v173
    %v175 = vsub.f32 2.0, %v174
    %v176 = vmul.f32 %v173, %v175
    %v177 = vmul.f32 %v176, 1.0614054
    %v178 = vadd.f32 %v177, -1.4531521
    %v179 = vmul.f32 %v178, %v176
    %v180 = vadd.f32 %v179, 1.4214138
    %v181 = vmul.f32 %v180, %v176
    %v182 = vadd.f32 %v181, -0.28449672
    %v183 = vmul.f32 %v182, %v176
    %v184 = vadd.f32 %v183, 0.2548296
    %v185 = vmul.f32 %v184, %v176
    %v186 = vsub.f32 0.0, %v170
    %v187 = vmul.f32 %v186, %v170
    %v188 = vmul.f32 %v187, 1.442695
    %v189 = vpow.pop %v188
    %v190 = vmul.f32 %v185, %v189
    %v191 = vsub.f32 1.0, %v190
    %v192 = vmul.f32 %v169, %v191
    %v193 = vadd.f32 %v192, 1.0
    %v194 = vmul.f32 %v166, %v193
    %v195 = vld [vmem:[#allocation2] sm:$0xff]
    %v196 = vld [vmem:[#allocation2 + $0x8] sm:$0xff]
    %v197 = vld [vmem:[#allocation2 + $0x10] sm:$0xff]
    %v198 = vld [vmem:[#allocation2 + $0x18] sm:$0xff]
    %v199 = vld [vmem:[#allocation2 + $0x20] sm:$0xff]
    %v200 = vld [vmem:[#allocation2 + $0x28] sm:$0xff]
    %v201 = vld [vmem:[#allocation2 + $0x30] sm:$0xff]
    %v202 = vld [vmem:[#allocation2 + $0x38] sm:$0xff]
    %v203 = vld [vmem:[#allocation2 + $0x40] sm:$0xff]
    %v204 = vld [vmem:[#allocation2 + $0x48] sm:$0xff]
    %v205 = vld [vmem:[#allocation2 + $0x50] sm:$0xff]
    %v206 = vld [vmem:[#allocation2 + $0x58] sm:$0xff]
    %v207 = vld [vmem:[#allocation2 + $0x60] sm:$0xff]
    %v208 = vld [vmem:[#allocation2 + $0x68] sm:$0xff]
    %v209 = vld [vmem:[#allocation2 + $0x70] sm:$0xff]
    %v210 = vld [vmem:[#allocation2 + $0x78] sm:$0xff]
    %v211 = vld [vmem:[%s4] sm:$0x1]
    %v213 = vlaneseq
    %v214 = vshrl.u32 %v213, 7
    %v215 = vsub.s32 0, %v214
    %v216 = vrot.slane %v211, %v215
    %218 = vmatprep.subr.mxu0 0.0
    %219 = vmatpush1.msra.mxu0 %v195
    %220 = vmatprep.subr.mxu0 0.0
    %221 = vmatpush1.msra.mxu0 %v196
    %222 = vmatprep.subr.mxu0 0.0
    %223 = vmatpush1.msra.mxu0 %v197
    %224 = vmatprep.subr.mxu0 0.0
    %225 = vmatpush1.msra.mxu0 %v198
    %226 = vmatprep.subr.mxu0 0.0
    %227 = vmatpush1.msra.mxu0 %v199
    %228 = vmatprep.subr.mxu0 0.0
    %229 = vmatpush1.msra.mxu0 %v200
    %230 = vmatprep.subr.mxu0 0.0
    %231 = vmatpush1.msra.mxu0 %v201
    %232 = vmatprep.subr.mxu0 0.0
    %233 = vmatpush1.msra.mxu0 %v202
    %234 = vmatprep.subr.mxu0 0.0
    %235 = vmatpush1.msra.mxu0 %v203
    %236 = vmatprep.subr.mxu0 0.0
    %237 = vmatpush1.msra.mxu0 %v204
    %238 = vmatprep.subr.mxu0 0.0
    %239 = vmatpush1.msra.mxu0 %v205
    %240 = vmatprep.subr.mxu0 0.0
    %241 = vmatpush1.msra.mxu0 %v206
    %242 = vmatprep.subr.mxu0 0.0
    %243 = vmatpush1.msra.mxu0 %v207
    %244 = vmatprep.subr.mxu0 0.0
    %245 = vmatpush1.msra.mxu0 %v208
    %246 = vmatprep.subr.mxu0 0.0
    %247 = vmatpush1.msra.mxu0 %v209
    %248 = vmatprep.subr.mxu0 0.0
    %249 = vmatpush1.msra.mxu0 %v210
    %250 = vmatprep.subr.mxu0 0.0
    %251 = vmatpush1.msra.mxu0 0.0
    %252 = vmatprep.subr.mxu0 0.0
    %253 = vmatpush1.msra.mxu0 0.0
    %254 = vmatprep.subr.mxu0 0.0
    %255 = vmatpush1.msra.mxu0 0.0
    %256 = vmatprep.subr.mxu0 0.0
    %257 = vmatpush1.msra.mxu0 0.0
    %258 = vmatprep.subr.mxu0 0.0
    %259 = vmatpush1.msra.mxu0 0.0
    %260 = vmatprep.subr.mxu0 0.0
    %261 = vmatpush1.msra.mxu0 0.0
    %262 = vmatprep.subr.mxu0 0.0
    %263 = vmatpush1.msra.mxu0 0.0
    %264 = vmatprep.subr.mxu0 0.0
    %265 = vmatpush1.msra.mxu0 0.0
    %266 = vmatprep.subr.mxu0 0.0
    %267 = vmatpush1.msra.mxu0 0.0
    %268 = vmatprep.subr.mxu0 0.0
    %269 = vmatpush1.msra.mxu0 0.0
    %270 = vmatprep.subr.mxu0 0.0
    %271 = vmatpush1.msra.mxu0 0.0
    %272 = vmatprep.subr.mxu0 0.0
    %273 = vmatpush1.msra.mxu0 0.0
    %274 = vmatprep.subr.mxu0 0.0
    %275 = vmatpush1.msra.mxu0 0.0
    %276 = vmatprep.subr.mxu0 0.0
    %277 = vmatpush1.msra.mxu0 0.0
    %278 = vmatprep.subr.mxu0 0.0
    %279 = vmatpush1.msra.mxu0 0.0
    %280 = vmatprep.subr.mxu0 0.0
    %281 = vmatpush1.msra.mxu0 0.0
    %282 = vmatprep.mubr.f32.mxu0 0.0
    %283 = vmatmul.mubr.f32.gmra.mrb[0].mxu0 %v194
    %v284 = vpop.f32.mrb[0].mxu0
    %v285 = vadd.f32 %v216, %v284
    %v286 = vpop.f32.mrb[0].mxu0
    %287 = vdwg.mxu0
    %v288 = vmul.f32 %v285, 0.5
    %v289 = vmul.f32 %v285, 0.70710677
    %vm290 = vcmp.ge.f32.partialorder %v289, 0.0
    %v291 = vsel %vm290, 1.0, -1.0
    %v292 = vand.u32 2147483647, %v289
    %v293 = vmul.f32 %v292, 0.3275911
    %v294 = vadd.f32 %v293, 1.0
    %v295 = vrcp.pop %v294
    %v296 = vmul.f32 %v294, %v295
    %v297 = vsub.f32 2.0, %v296
    %v298 = vmul.f32 %v295, %v297
    %v299 = vmul.f32 %v298, 1.0614054
    %v300 = vadd.f32 %v299, -1.4531521
    %v301 = vmul.f32 %v300, %v298
    %v302 = vadd.f32 %v301, 1.4214138
    %v303 = vmul.f32 %v302, %v298
    %v304 = vadd.f32 %v303, -0.28449672
    %v305 = vmul.f32 %v304, %v298
    %v306 = vadd.f32 %v305, 0.2548296
    %v307 = vmul.f32 %v306, %v298
    %v308 = vsub.f32 0.0, %v292
    %v309 = vmul.f32 %v308, %v292
    %v310 = vmul.f32 %v309, 1.442695
    %v311 = vpow.pop %v310
    %v312 = vmul.f32 %v307, %v311
    %v313 = vsub.f32 1.0, %v312
    %v314 = vmul.f32 %v291, %v313
    %v315 = vadd.f32 %v314, 1.0
    %v316 = vmul.f32 %v288, %v315
    %v317 = vld [vmem:[#allocation5] sm:$0xff]
    %v318 = vld [vmem:[#allocation5 + $0x8] sm:$0xff]
    %v319 = vld [vmem:[#allocation5 + $0x10] sm:$0xff]
    %v320 = vld [vmem:[#allocation5 + $0x18] sm:$0xff]
    %v321 = vld [vmem:[#allocation5 + $0x20] sm:$0xff]
    %v322 = vld [vmem:[#allocation5 + $0x28] sm:$0xff]
    %v323 = vld [vmem:[#allocation5 + $0x30] sm:$0xff]
    %v324 = vld [vmem:[#allocation5 + $0x38] sm:$0xff]
    %v325 = vld [vmem:[#allocation5 + $0x40] sm:$0xff]
    %v326 = vld [vmem:[#allocation5 + $0x48] sm:$0xff]
    %v327 = vld [vmem:[#allocation5 + $0x50] sm:$0xff]
    %v328 = vld [vmem:[#allocation5 + $0x58] sm:$0xff]
    %v329 = vld [vmem:[#allocation5 + $0x60] sm:$0xff]
    %v330 = vld [vmem:[#allocation5 + $0x68] sm:$0xff]
    %v331 = vld [vmem:[#allocation5 + $0x70] sm:$0xff]
    %v332 = vld [vmem:[#allocation5 + $0x78] sm:$0xff]
    %v333 = vld [vmem:[%s6] sm:$0x1]
    %v335 = vlaneseq
    %v336 = vshrl.u32 %v335, 7
    %v337 = vsub.s32 0, %v336
    %v338 = vrot.slane %v333, %v337
    %340 = vmatprep.subr.mxu0 0.0
    %341 = vmatpush1.msra.mxu0 %v317
    %342 = vmatprep.subr.mxu0 0.0
    %343 = vmatpush1.msra.mxu0 %v318
    %344 = vmatprep.subr.mxu0 0.0
    %345 = vmatpush1.msra.mxu0 %v319
    %346 = vmatprep.subr.mxu0 0.0
    %347 = vmatpush1.msra.mxu0 %v320
    %348 = vmatprep.subr.mxu0 0.0
    %349 = vmatpush1.msra.mxu0 %v321
    %350 = vmatprep.subr.mxu0 0.0
    %351 = vmatpush1.msra.mxu0 %v322
    %352 = vmatprep.subr.mxu0 0.0
    %353 = vmatpush1.msra.mxu0 %v323
    %354 = vmatprep.subr.mxu0 0.0
    %355 = vmatpush1.msra.mxu0 %v324
    %356 = vmatprep.subr.mxu0 0.0
    %357 = vmatpush1.msra.mxu0 %v325
    %358 = vmatprep.subr.mxu0 0.0
    %359 = vmatpush1.msra.mxu0 %v326
    %360 = vmatprep.subr.mxu0 0.0
    %361 = vmatpush1.msra.mxu0 %v327
    %362 = vmatprep.subr.mxu0 0.0
    %363 = vmatpush1.msra.mxu0 %v328
    %364 = vmatprep.subr.mxu0 0.0
    %365 = vmatpush1.msra.mxu0 %v329
    %366 = vmatprep.subr.mxu0 0.0
    %367 = vmatpush1.msra.mxu0 %v330
    %368 = vmatprep.subr.mxu0 0.0
    %369 = vmatpush1.msra.mxu0 %v331
    %370 = vmatprep.subr.mxu0 0.0
    %371 = vmatpush1.msra.mxu0 %v332
    %372 = vmatprep.subr.mxu0 0.0
    %373 = vmatpush1.msra.mxu0 0.0
    %374 = vmatprep.subr.mxu0 0.0
    %375 = vmatpush1.msra.mxu0 0.0
    %376 = vmatprep.subr.mxu0 0.0
    %377 = vmatpush1.msra.mxu0 0.0
    %378 = vmatprep.subr.mxu0 0.0
    %379 = vmatpush1.msra.mxu0 0.0
    %380 = vmatprep.subr.mxu0 0.0
    %381 = vmatpush1.msra.mxu0 0.0
    %382 = vmatprep.subr.mxu0 0.0
    %383 = vmatpush1.msra.mxu0 0.0
    %384 = vmatprep.subr.mxu0 0.0
    %385 = vmatpush1.msra.mxu0 0.0
    %386 = vmatprep.subr.mxu0 0.0
    %387 = vmatpush1.msra.mxu0 0.0
    %388 = vmatprep.subr.mxu0 0.0
    %389 = vmatpush1.msra.mxu0 0.0
    %390 = vmatprep.subr.mxu0 0.0
    %391 = vmatpush1.msra.mxu0 0.0
    %392 = vmatprep.subr.mxu0 0.0
    %393 = vmatpush1.msra.mxu0 0.0
    %394 = vmatprep.subr.mxu0 0.0
    %395 = vmatpush1.msra.mxu0 0.0
    %396 = vmatprep.subr.mxu0 0.0
    %397 = vmatpush1.msra.mxu0 0.0
    %398 = vmatprep.subr.mxu0 0.0
    %399 = vmatpush1.msra.mxu0 0.0
    %400 = vmatprep.subr.mxu0 0.0
    %401 = vmatpush1.msra.mxu0 0.0
    %402 = vmatprep.subr.mxu0 0.0
    %403 = vmatpush1.msra.mxu0 0.0
    %404 = vmatprep.mubr.f32.mxu0 0.0
    %405 = vmatmul.mubr.f32.gmra.mrb[0].mxu0 %v316
    %v406 = vpop.f32.mrb[0].mxu0
    %v407 = vadd.f32 %v338, %v406
    %v408 = vpop.f32.mrb[0].mxu0
    %409 = vdwg.mxu0
    %v410 = vmul.f32 %v407, 0.5
    %v411 = vmul.f32 %v407, 0.70710677
    %vm412 = vcmp.ge.f32.partialorder %v411, 0.0
    %v413 = vsel %vm412, 1.0, -1.0
    %v414 = vand.u32 2147483647, %v411
    %v415 = vmul.f32 %v414, 0.3275911
    %v416 = vadd.f32 %v415, 1.0
    %v417 = vrcp.pop %v416
    %v418 = vmul.f32 %v416, %v417
    %v419 = vsub.f32 2.0, %v418
    %v420 = vmul.f32 %v417, %v419
    %v421 = vmul.f32 %v420, 1.0614054
    %v422 = vadd.f32 %v421, -1.4531521
    %v423 = vmul.f32 %v422, %v420
    %v424 = vadd.f32 %v423, 1.4214138
    %v425 = vmul.f32 %v424, %v420
    %v426 = vadd.f32 %v425, -0.28449672
    %v427 = vmul.f32 %v426, %v420
    %v428 = vadd.f32 %v427, 0.2548296
    %v429 = vmul.f32 %v428, %v420
    %v430 = vsub.f32 0.0, %v414
    %v431 = vmul.f32 %v430, %v414
    %v432 = vmul.f32 %v431, 1.442695
    %v433 = vpow.pop %v432
    %v434 = vmul.f32 %v429, %v433
    %v435 = vsub.f32 1.0, %v434
    %v436 = vmul.f32 %v413, %v435
    %v437 = vadd.f32 %v436, 1.0
    %v438 = vmul.f32 %v410, %v437
    %v439 = vld [vmem:[#allocation7] sm:$0xff]
    %v440 = vld [vmem:[#allocation7 + $0x8] sm:$0xff]
    %v441 = vld [vmem:[#allocation7 + $0x10] sm:$0xff]
    %v442 = vld [vmem:[#allocation7 + $0x18] sm:$0xff]
    %v443 = vld [vmem:[#allocation7 + $0x20] sm:$0xff]
    %v444 = vld [vmem:[#allocation7 + $0x28] sm:$0xff]
    %v445 = vld [vmem:[#allocation7 + $0x30] sm:$0xff]
    %v446 = vld [vmem:[#allocation7 + $0x38] sm:$0xff]
    %v447 = vld [vmem:[#allocation7 + $0x40] sm:$0xff]
    %v448 = vld [vmem:[#allocation7 + $0x48] sm:$0xff]
    %v449 = vld [vmem:[#allocation7 + $0x50] sm:$0xff]
    %v450 = vld [vmem:[#allocation7 + $0x58] sm:$0xff]
    %v451 = vld [vmem:[#allocation7 + $0x60] sm:$0xff]
    %v452 = vld [vmem:[#allocation7 + $0x68] sm:$0xff]
    %v453 = vld [vmem:[#allocation7 + $0x70] sm:$0xff]
    %v454 = vld [vmem:[#allocation7 + $0x78] sm:$0xff]
    %v455 = vld [vmem:[#allocation7 + $0x80] sm:$0xff]
    %v456 = vld [vmem:[#allocation7 + $0x88] sm:$0xff]
    %v457 = vld [vmem:[#allocation7 + $0x90] sm:$0xff]
    %v458 = vld [vmem:[#allocation7 + $0x98] sm:$0xff]
    %v459 = vld [vmem:[#allocation7 + $0xa0] sm:$0xff]
    %v460 = vld [vmem:[#allocation7 + $0xa8] sm:$0xff]
    %v461 = vld [vmem:[#allocation7 + $0xb0] sm:$0xff]
    %v462 = vld [vmem:[#allocation7 + $0xb8] sm:$0xff]
    %v463 = vld [vmem:[#allocation7 + $0xc0] sm:$0xff]
    %v464 = vld [vmem:[#allocation7 + $0xc8] sm:$0xff]
    %v465 = vld [vmem:[#allocation7 + $0xd0] sm:$0xff]
    %v466 = vld [vmem:[#allocation7 + $0xd8] sm:$0xff]
    %v467 = vld [vmem:[#allocation7 + $0xe0] sm:$0xff]
    %v468 = vld [vmem:[#allocation7 + $0xe8] sm:$0xff]
    %v469 = vld [vmem:[#allocation7 + $0xf0] sm:$0xff]
    %v470 = vld [vmem:[#allocation7 + $0xf8] sm:$0xff]
    %v471 = vld [vmem:[#allocation7 + $0x100] sm:$0xff]
    %v472 = vld [vmem:[#allocation7 + $0x108] sm:$0xff]
    %v473 = vld [vmem:[#allocation7 + $0x110] sm:$0xff]
    %v474 = vld [vmem:[#allocation7 + $0x118] sm:$0xff]
    %v475 = vld [vmem:[#allocation7 + $0x120] sm:$0xff]
    %v476 = vld [vmem:[#allocation7 + $0x128] sm:$0xff]
    %v477 = vld [vmem:[#allocation7 + $0x130] sm:$0xff]
    %v478 = vld [vmem:[#allocation7 + $0x138] sm:$0xff]
    %v479 = vld [vmem:[#allocation7 + $0x140] sm:$0xff]
    %v480 = vld [vmem:[#allocation7 + $0x148] sm:$0xff]
    %v481 = vld [vmem:[#allocation7 + $0x150] sm:$0xff]
    %v482 = vld [vmem:[#allocation7 + $0x158] sm:$0xff]
    %v483 = vld [vmem:[#allocation7 + $0x160] sm:$0xff]
    %v484 = vld [vmem:[#allocation7 + $0x168] sm:$0xff]
    %v485 = vld [vmem:[#allocation7 + $0x170] sm:$0xff]
    %v486 = vld [vmem:[#allocation7 + $0x178] sm:$0xff]
    %v487 = vld [vmem:[#allocation7 + $0x180] sm:$0xff]
    %v488 = vld [vmem:[#allocation7 + $0x188] sm:$0xff]
    %v489 = vld [vmem:[#allocation7 + $0x190] sm:$0xff]
    %v490 = vld [vmem:[#allocation7 + $0x198] sm:$0xff]
    %v491 = vld [vmem:[#allocation7 + $0x1a0] sm:$0xff]
    %v492 = vld [vmem:[#allocation7 + $0x1a8] sm:$0xff]
    %v493 = vld [vmem:[#allocation7 + $0x1b0] sm:$0xff]
    %v494 = vld [vmem:[#allocation7 + $0x1b8] sm:$0xff]
    %v495 = vld [vmem:[#allocation7 + $0x1c0] sm:$0xff]
    %v496 = vld [vmem:[#allocation7 + $0x1c8] sm:$0xff]
    %v497 = vld [vmem:[#allocation7 + $0x1d0] sm:$0xff]
    %v498 = vld [vmem:[#allocation7 + $0x1d8] sm:$0xff]
    %v499 = vld [vmem:[#allocation7 + $0x1e0] sm:$0xff]
    %v500 = vld [vmem:[#allocation7 + $0x1e8] sm:$0xff]
    %v501 = vld [vmem:[#allocation7 + $0x1f0] sm:$0xff]
    %v502 = vld [vmem:[#allocation7 + $0x1f8] sm:$0xff]
    %v503 = vld [vmem:[#allocation7 + $0x200] sm:$0xff]
    %v504 = vld [vmem:[#allocation7 + $0x208] sm:$0xff]
    %v505 = vld [vmem:[#allocation7 + $0x210] sm:$0xff]
    %v506 = vld [vmem:[#allocation7 + $0x218] sm:$0xff]
    %v507 = vld [vmem:[#allocation7 + $0x220] sm:$0xff]
    %v508 = vld [vmem:[#allocation7 + $0x228] sm:$0xff]
    %v509 = vld [vmem:[#allocation7 + $0x230] sm:$0xff]
    %v510 = vld [vmem:[#allocation7 + $0x238] sm:$0xff]
    %v511 = vld [vmem:[#allocation7 + $0x240] sm:$0xff]
    %v512 = vld [vmem:[#allocation7 + $0x248] sm:$0xff]
    %v513 = vld [vmem:[#allocation7 + $0x250] sm:$0xff]
    %v514 = vld [vmem:[#allocation7 + $0x258] sm:$0xff]
    %v515 = vld [vmem:[#allocation7 + $0x260] sm:$0xff]
    %v516 = vld [vmem:[#allocation7 + $0x268] sm:$0xff]
    %v517 = vld [vmem:[#allocation7 + $0x270] sm:$0xff]
    %v518 = vld [vmem:[#allocation7 + $0x278] sm:$0xff]
    %v519 = vld [vmem:[#allocation7 + $0x280] sm:$0xff]
    %v520 = vld [vmem:[#allocation7 + $0x288] sm:$0xff]
    %v521 = vld [vmem:[#allocation7 + $0x290] sm:$0xff]
    %v522 = vld [vmem:[#allocation7 + $0x298] sm:$0xff]
    %v523 = vld [vmem:[#allocation7 + $0x2a0] sm:$0xff]
    %v524 = vld [vmem:[#allocation7 + $0x2a8] sm:$0xff]
    %v525 = vld [vmem:[#allocation7 + $0x2b0] sm:$0xff]
    %v526 = vld [vmem:[#allocation7 + $0x2b8] sm:$0xff]
    %v527 = vld [vmem:[#allocation7 + $0x2c0] sm:$0xff]
    %v528 = vld [vmem:[#allocation7 + $0x2c8] sm:$0xff]
    %v529 = vld [vmem:[#allocation7 + $0x2d0] sm:$0xff]
    %v530 = vld [vmem:[#allocation7 + $0x2d8] sm:$0xff]
    %v531 = vld [vmem:[#allocation7 + $0x2e0] sm:$0xff]
    %v532 = vld [vmem:[#allocation7 + $0x2e8] sm:$0xff]
    %v533 = vld [vmem:[#allocation7 + $0x2f0] sm:$0xff]
    %v534 = vld [vmem:[#allocation7 + $0x2f8] sm:$0xff]
    %v535 = vld [vmem:[#allocation7 + $0x300] sm:$0xff]
    %v536 = vld [vmem:[#allocation7 + $0x308] sm:$0xff]
    %v537 = vld [vmem:[#allocation7 + $0x310] sm:$0xff]
    %v538 = vld [vmem:[#allocation7 + $0x318] sm:$0xff]
    %v539 = vld [vmem:[#allocation7 + $0x320] sm:$0xff]
    %v540 = vld [vmem:[#allocation7 + $0x328] sm:$0xff]
    %v541 = vld [vmem:[#allocation7 + $0x330] sm:$0xff]
    %v542 = vld [vmem:[#allocation7 + $0x338] sm:$0xff]
    %v543 = vld [vmem:[#allocation7 + $0x340] sm:$0xff]
    %v544 = vld [vmem:[#allocation7 + $0x348] sm:$0xff]
    %v545 = vld [vmem:[#allocation7 + $0x350] sm:$0xff]
    %v546 = vld [vmem:[#allocation7 + $0x358] sm:$0xff]
    %v547 = vld [vmem:[#allocation7 + $0x360] sm:$0xff]
    %v548 = vld [vmem:[#allocation7 + $0x368] sm:$0xff]
    %v549 = vld [vmem:[#allocation7 + $0x370] sm:$0xff]
    %v550 = vld [vmem:[#allocation7 + $0x378] sm:$0xff]
    %v551 = vld [vmem:[#allocation7 + $0x380] sm:$0xff]
    %v552 = vld [vmem:[#allocation7 + $0x388] sm:$0xff]
    %v553 = vld [vmem:[#allocation7 + $0x390] sm:$0xff]
    %v554 = vld [vmem:[#allocation7 + $0x398] sm:$0xff]
    %v555 = vld [vmem:[#allocation7 + $0x3a0] sm:$0xff]
    %v556 = vld [vmem:[#allocation7 + $0x3a8] sm:$0xff]
    %v557 = vld [vmem:[#allocation7 + $0x3b0] sm:$0xff]
    %v558 = vld [vmem:[#allocation7 + $0x3b8] sm:$0xff]
    %v559 = vld [vmem:[#allocation7 + $0x3c0] sm:$0xff]
    %v560 = vld [vmem:[#allocation7 + $0x3c8] sm:$0xff]
    %v561 = vld [vmem:[#allocation7 + $0x3d0] sm:$0xff]
    %v562 = vld [vmem:[#allocation7 + $0x3d8] sm:$0xff]
    %v563 = vld [vmem:[#allocation7 + $0x3e0] sm:$0xff]
    %v564 = vld [vmem:[#allocation7 + $0x3e8] sm:$0xff]
    %v565 = vld [vmem:[#allocation7 + $0x3f0] sm:$0xff]
    %v566 = vld [vmem:[#allocation7 + $0x3f8] sm:$0xff]
    %v567 = vld [vmem:[#allocation7 + $0x400] sm:$0xff]
    %v568 = vld [vmem:[#allocation7 + $0x408] sm:$0xff]
    %v569 = vld [vmem:[#allocation7 + $0x410] sm:$0xff]
    %v570 = vld [vmem:[#allocation7 + $0x418] sm:$0xff]
    %v571 = vld [vmem:[#allocation7 + $0x420] sm:$0xff]
    %v572 = vld [vmem:[#allocation7 + $0x428] sm:$0xff]
    %v573 = vld [vmem:[#allocation7 + $0x430] sm:$0xff]
    %v574 = vld [vmem:[#allocation7 + $0x438] sm:$0xff]
    %v575 = vld [vmem:[#allocation7 + $0x440] sm:$0xff]
    %v576 = vld [vmem:[#allocation7 + $0x448] sm:$0xff]
    %v577 = vld [vmem:[#allocation7 + $0x450] sm:$0xff]
    %v578 = vld [vmem:[#allocation7 + $0x458] sm:$0xff]
    %v579 = vld [vmem:[#allocation7 + $0x460] sm:$0xff]
    %v580 = vld [vmem:[#allocation7 + $0x468] sm:$0xff]
    %v581 = vld [vmem:[#allocation7 + $0x470] sm:$0xff]
    %v582 = vld [vmem:[#allocation7 + $0x478] sm:$0xff]
    %v583 = vld [vmem:[#allocation7 + $0x480] sm:$0xff]
    %v584 = vld [vmem:[#allocation7 + $0x488] sm:$0xff]
    %v585 = vld [vmem:[#allocation7 + $0x490] sm:$0xff]
    %v586 = vld [vmem:[#allocation7 + $0x498] sm:$0xff]
    %v587 = vld [vmem:[#allocation7 + $0x4a0] sm:$0xff]
    %v588 = vld [vmem:[#allocation7 + $0x4a8] sm:$0xff]
    %v589 = vld [vmem:[#allocation7 + $0x4b0] sm:$0xff]
    %v590 = vld [vmem:[#allocation7 + $0x4b8] sm:$0xff]
    %v591 = vld [vmem:[#allocation7 + $0x4c0] sm:$0xff]
    %v592 = vld [vmem:[#allocation7 + $0x4c8] sm:$0xff]
    %v593 = vld [vmem:[#allocation7 + $0x4d0] sm:$0xff]
    %v594 = vld [vmem:[#allocation7 + $0x4d8] sm:$0xff]
    %v595 = vld [vmem:[#allocation7 + $0x4e0] sm:$0xff]
    %v596 = vld [vmem:[#allocation7 + $0x4e8] sm:$0xff]
    %v597 = vld [vmem:[#allocation7 + $0x4f0] sm:$0xff]
    %v598 = vld [vmem:[#allocation7 + $0x4f8] sm:$0xff]
    %v599 = vld [vmem:[#allocation7 + $0x500] sm:$0xff]
    %v600 = vld [vmem:[#allocation7 + $0x508] sm:$0xff]
    %v601 = vld [vmem:[#allocation7 + $0x510] sm:$0xff]
    %v602 = vld [vmem:[#allocation7 + $0x518] sm:$0xff]
    %v603 = vld [vmem:[#allocation7 + $0x520] sm:$0xff]
    %v604 = vld [vmem:[#allocation7 + $0x528] sm:$0xff]
    %v605 = vld [vmem:[#allocation7 + $0x530] sm:$0xff]
    %v606 = vld [vmem:[#allocation7 + $0x538] sm:$0xff]
    %v607 = vld [vmem:[#allocation7 + $0x540] sm:$0xff]
    %v608 = vld [vmem:[#allocation7 + $0x548] sm:$0xff]
    %v609 = vld [vmem:[#allocation7 + $0x550] sm:$0xff]
    %v610 = vld [vmem:[#allocation7 + $0x558] sm:$0xff]
    %v611 = vld [vmem:[#allocation7 + $0x560] sm:$0xff]
    %v612 = vld [vmem:[#allocation7 + $0x568] sm:$0xff]
    %v613 = vld [vmem:[#allocation7 + $0x570] sm:$0xff]
    %v614 = vld [vmem:[#allocation7 + $0x578] sm:$0xff]
    %v615 = vld [vmem:[#allocation7 + $0x580] sm:$0xff]
    %v616 = vld [vmem:[#allocation7 + $0x588] sm:$0xff]
    %v617 = vld [vmem:[#allocation7 + $0x590] sm:$0xff]
    %v618 = vld [vmem:[#allocation7 + $0x598] sm:$0xff]
    %v619 = vld [vmem:[#allocation7 + $0x5a0] sm:$0xff]
    %v620 = vld [vmem:[#allocation7 + $0x5a8] sm:$0xff]
    %v621 = vld [vmem:[#allocation7 + $0x5b0] sm:$0xff]
    %v622 = vld [vmem:[#allocation7 + $0x5b8] sm:$0xff]
    %v623 = vld [vmem:[#allocation7 + $0x5c0] sm:$0xff]
    %v624 = vld [vmem:[#allocation7 + $0x5c8] sm:$0xff]
    %v625 = vld [vmem:[#allocation7 + $0x5d0] sm:$0xff]
    %v626 = vld [vmem:[#allocation7 + $0x5d8] sm:$0xff]
    %v627 = vld [vmem:[#allocation7 + $0x5e0] sm:$0xff]
    %v628 = vld [vmem:[#allocation7 + $0x5e8] sm:$0xff]
    %v629 = vld [vmem:[#allocation7 + $0x5f0] sm:$0xff]
    %v630 = vld [vmem:[#allocation7 + $0x5f8] sm:$0xff]
    %v631 = vld [vmem:[#allocation7 + $0x600] sm:$0xff]
    %v632 = vld [vmem:[#allocation7 + $0x608] sm:$0xff]
    %v633 = vld [vmem:[#allocation7 + $0x610] sm:$0xff]
    %v634 = vld [vmem:[#allocation7 + $0x618] sm:$0xff]
    %v635 = vld [vmem:[#allocation7 + $0x620] sm:$0xff]
    %v636 = vld [vmem:[#allocation7 + $0x628] sm:$0xff]
    %v637 = vld [vmem:[#allocation7 + $0x630] sm:$0xff]
    %v638 = vld [vmem:[#allocation7 + $0x638] sm:$0xff]
    %v639 = vld [vmem:[#allocation7 + $0x640] sm:$0xff]
    %v640 = vld [vmem:[#allocation7 + $0x648] sm:$0xff]
    %v641 = vld [vmem:[#allocation7 + $0x650] sm:$0xff]
    %v642 = vld [vmem:[#allocation7 + $0x658] sm:$0xff]
    %v643 = vld [vmem:[#allocation7 + $0x660] sm:$0xff]
    %v644 = vld [vmem:[#allocation7 + $0x668] sm:$0xff]
    %v645 = vld [vmem:[#allocation7 + $0x670] sm:$0xff]
    %v646 = vld [vmem:[#allocation7 + $0x678] sm:$0xff]
    %v647 = vld [vmem:[#allocation7 + $0x680] sm:$0xff]
    %v648 = vld [vmem:[#allocation7 + $0x688] sm:$0xff]
    %v649 = vld [vmem:[#allocation7 + $0x690] sm:$0xff]
    %v650 = vld [vmem:[#allocation7 + $0x698] sm:$0xff]
    %v651 = vld [vmem:[#allocation7 + $0x6a0] sm:$0xff]
    %v652 = vld [vmem:[#allocation7 + $0x6a8] sm:$0xff]
    %v653 = vld [vmem:[#allocation7 + $0x6b0] sm:$0xff]
    %v654 = vld [vmem:[#allocation7 + $0x6b8] sm:$0xff]
    %v655 = vld [vmem:[#allocation7 + $0x6c0] sm:$0xff]
    %v656 = vld [vmem:[#allocation7 + $0x6c8] sm:$0xff]
    %v657 = vld [vmem:[#allocation7 + $0x6d0] sm:$0xff]
    %v658 = vld [vmem:[#allocation7 + $0x6d8] sm:$0xff]
    %v659 = vld [vmem:[#allocation7 + $0x6e0] sm:$0xff]
    %v660 = vld [vmem:[#allocation7 + $0x6e8] sm:$0xff]
    %v661 = vld [vmem:[#allocation7 + $0x6f0] sm:$0xff]
    %v662 = vld [vmem:[#allocation7 + $0x6f8] sm:$0xff]
    %v663 = vld [vmem:[#allocation7 + $0x700] sm:$0xff]
    %v664 = vld [vmem:[#allocation7 + $0x708] sm:$0xff]
    %v665 = vld [vmem:[#allocation7 + $0x710] sm:$0xff]
    %v666 = vld [vmem:[#allocation7 + $0x718] sm:$0xff]
    %v667 = vld [vmem:[#allocation7 + $0x720] sm:$0xff]
    %v668 = vld [vmem:[#allocation7 + $0x728] sm:$0xff]
    %v669 = vld [vmem:[#allocation7 + $0x730] sm:$0xff]
    %v670 = vld [vmem:[#allocation7 + $0x738] sm:$0xff]
    %v671 = vld [vmem:[#allocation7 + $0x740] sm:$0xff]
    %v672 = vld [vmem:[#allocation7 + $0x748] sm:$0xff]
    %v673 = vld [vmem:[#allocation7 + $0x750] sm:$0xff]
    %v674 = vld [vmem:[#allocation7 + $0x758] sm:$0xff]
    %v675 = vld [vmem:[#allocation7 + $0x760] sm:$0xff]
    %v676 = vld [vmem:[#allocation7 + $0x768] sm:$0xff]
    %v677 = vld [vmem:[#allocation7 + $0x770] sm:$0xff]
    %v678 = vld [vmem:[#allocation7 + $0x778] sm:$0xff]
    %v679 = vld [vmem:[#allocation7 + $0x780] sm:$0xff]
    %v680 = vld [vmem:[#allocation7 + $0x788] sm:$0xff]
    %v681 = vld [vmem:[#allocation7 + $0x790] sm:$0xff]
    %v682 = vld [vmem:[#allocation7 + $0x798] sm:$0xff]
    %v683 = vld [vmem:[#allocation7 + $0x7a0] sm:$0xff]
    %v684 = vld [vmem:[#allocation7 + $0x7a8] sm:$0xff]
    %v685 = vld [vmem:[#allocation7 + $0x7b0] sm:$0xff]
    %v686 = vld [vmem:[#allocation7 + $0x7b8] sm:$0xff]
    %v687 = vld [vmem:[#allocation7 + $0x7c0] sm:$0xff]
    %v688 = vld [vmem:[#allocation7 + $0x7c8] sm:$0xff]
    %v689 = vld [vmem:[#allocation7 + $0x7d0] sm:$0xff]
    %v690 = vld [vmem:[#allocation7 + $0x7d8] sm:$0xff]
    %v691 = vld [vmem:[#allocation7 + $0x7e0] sm:$0xff]
    %v692 = vld [vmem:[#allocation7 + $0x7e8] sm:$0xff]
    %v693 = vld [vmem:[#allocation7 + $0x7f0] sm:$0xff]
    %v694 = vld [vmem:[#allocation7 + $0x7f8] sm:$0xff]
    %v695 = vld [vmem:[%s8] sm:$0xff]
    %v696 = vld [vmem:[%s8 + $0x8] sm:$0xff]
    %v699 = vlaneseq
    %v700 = vshrl.u32 %v699, 7
    %v701 = vsub.s32 0, %v700
    %v702 = vrot.slane %v695, %v701
    %v703 = vlaneseq
    %v704 = vshrl.u32 %v703, 7
    %v705 = vsub.s32 1, %v704
    %v706 = vrot.slane %v695, %v705
    %v707 = vlaneseq
    %v708 = vshrl.u32 %v707, 7
    %v709 = vsub.s32 2, %v708
    %v710 = vrot.slane %v695, %v709
    %v711 = vlaneseq
    %v712 = vshrl.u32 %v711, 7
    %v713 = vsub.s32 3, %v712
    %v714 = vrot.slane %v695, %v713
    %v715 = vlaneseq
    %v716 = vshrl.u32 %v715, 7
    %v717 = vsub.s32 4, %v716
    %v718 = vrot.slane %v695, %v717
    %v719 = vlaneseq
    %v720 = vshrl.u32 %v719, 7
    %v721 = vsub.s32 5, %v720
    %v722 = vrot.slane %v695, %v721
    %v723 = vlaneseq
    %v724 = vshrl.u32 %v723, 7
    %v725 = vsub.s32 6, %v724
    %v726 = vrot.slane %v695, %v725
    %v727 = vlaneseq
    %v728 = vshrl.u32 %v727, 7
    %v729 = vsub.s32 7, %v728
    %v730 = vrot.slane %v695, %v729
    %v731 = vlaneseq
    %v732 = vshrl.u32 %v731, 7
    %v733 = vsub.s32 0, %v732
    %v734 = vrot.slane %v696, %v733
    %v735 = vlaneseq
    %v736 = vshrl.u32 %v735, 7
    %v737 = vsub.s32 1, %v736
    %v738 = vrot.slane %v696, %v737
    %v739 = vlaneseq
    %v740 = vshrl.u32 %v739, 7
    %v741 = vsub.s32 2, %v740
    %v742 = vrot.slane %v696, %v741
    %v743 = vlaneseq
    %v744 = vshrl.u32 %v743, 7
    %v745 = vsub.s32 3, %v744
    %v746 = vrot.slane %v696, %v745
    %v747 = vlaneseq
    %v748 = vshrl.u32 %v747, 7
    %v749 = vsub.s32 4, %v748
    %v750 = vrot.slane %v696, %v749
    %v751 = vlaneseq
    %v752 = vshrl.u32 %v751, 7
    %v753 = vsub.s32 5, %v752
    %v754 = vrot.slane %v696, %v753
    %v755 = vlaneseq
    %v756 = vshrl.u32 %v755, 7
    %v757 = vsub.s32 6, %v756
    %v758 = vrot.slane %v696, %v757
    %v759 = vlaneseq
    %v760 = vshrl.u32 %v759, 7
    %v761 = vsub.s32 7, %v760
    %v762 = vrot.slane %v696, %v761
    %779 = vmatprep.subr.mxu0 %v440
    %780 = vmatpush1.msra.mxu0 %v439
    %781 = vmatprep.subr.mxu0 %v456
    %782 = vmatpush1.msra.mxu0 %v455
    %783 = vmatprep.subr.mxu0 %v472
    %784 = vmatpush1.msra.mxu0 %v471
    %785 = vmatprep.subr.mxu0 %v488
    %786 = vmatpush1.msra.mxu0 %v487
    %787 = vmatprep.subr.mxu0 %v504
    %788 = vmatpush1.msra.mxu0 %v503
    %789 = vmatprep.subr.mxu0 %v520
    %790 = vmatpush1.msra.mxu0 %v519
    %791 = vmatprep.subr.mxu0 %v536
    %792 = vmatpush1.msra.mxu0 %v535
    %793 = vmatprep.subr.mxu0 %v552
    %794 = vmatpush1.msra.mxu0 %v551
    %795 = vmatprep.subr.mxu0 %v568
    %796 = vmatpush1.msra.mxu0 %v567
    %797 = vmatprep.subr.mxu0 %v584
    %798 = vmatpush1.msra.mxu0 %v583
    %799 = vmatprep.subr.mxu0 %v600
    %800 = vmatpush1.msra.mxu0 %v599
    %801 = vmatprep.subr.mxu0 %v616
    %802 = vmatpush1.msra.mxu0 %v615
    %803 = vmatprep.subr.mxu0 %v632
    %804 = vmatpush1.msra.mxu0 %v631
    %805 = vmatprep.subr.mxu0 %v648
    %806 = vmatpush1.msra.mxu0 %v647
    %807 = vmatprep.subr.mxu0 %v664
    %808 = vmatpush1.msra.mxu0 %v663
    %809 = vmatprep.subr.mxu0 %v680
    %810 = vmatpush1.msra.mxu0 %v679
    %811 = vmatprep.subr.mxu0 0.0
    %812 = vmatpush1.msra.mxu0 0.0
    %813 = vmatprep.subr.mxu0 0.0
    %814 = vmatpush1.msra.mxu0 0.0
    %815 = vmatprep.subr.mxu0 0.0
    %816 = vmatpush1.msra.mxu0 0.0
    %817 = vmatprep.subr.mxu0 0.0
    %818 = vmatpush1.msra.mxu0 0.0
    %819 = vmatprep.subr.mxu0 0.0
    %820 = vmatpush1.msra.mxu0 0.0
    %821 = vmatprep.subr.mxu0 0.0
    %822 = vmatpush1.msra.mxu0 0.0
    %823 = vmatprep.subr.mxu0 0.0
    %824 = vmatpush1.msra.mxu0 0.0
    %825 = vmatprep.subr.mxu0 0.0
    %826 = vmatpush1.msra.mxu0 0.0
    %827 = vmatprep.subr.mxu0 0.0
    %828 = vmatpush1.msra.mxu0 0.0
    %829 = vmatprep.subr.mxu0 0.0
    %830 = vmatpush1.msra.mxu0 0.0
    %831 = vmatprep.subr.mxu0 0.0
    %832 = vmatpush1.msra.mxu0 0.0
    %833 = vmatprep.subr.mxu0 0.0
    %834 = vmatpush1.msra.mxu0 0.0
    %835 = vmatprep.subr.mxu0 0.0
    %836 = vmatpush1.msra.mxu0 0.0
    %837 = vmatprep.subr.mxu0 0.0
    %838 = vmatpush1.msra.mxu0 0.0
    %839 = vmatprep.subr.mxu0 0.0
    %840 = vmatpush1.msra.mxu0 0.0
    %841 = vmatprep.subr.mxu0 0.0
    %842 = vmatpush1.msra.mxu0 0.0
    %843 = vmatprep.mubr.f32.mxu0 0.0
    %844 = vmatmul.mubr.f32.gmra.mrb[0].mxu0 %v438
    %v845 = vpop.f32.mrb[0].mxu0
    %v846 = vadd.f32 %v702, %v845
    %v847 = vpop.f32.mrb[0].mxu0
    %v848 = vadd.f32 %v706, %v847
    %849 = vdwg.mxu0
    %850 = vmatprep.subr.mxu0 %v442
    %851 = vmatpush1.msra.mxu0 %v441
    %852 = vmatprep.subr.mxu0 %v458
    %853 = vmatpush1.msra.mxu0 %v457
    %854 = vmatprep.subr.mxu0 %v474
    %855 = vmatpush1.msra.mxu0 %v473
    %856 = vmatprep.subr.mxu0 %v490
    %857 = vmatpush1.msra.mxu0 %v489
    %858 = vmatprep.subr.mxu0 %v506
    %859 = vmatpush1.msra.mxu0 %v505
    %860 = vmatprep.subr.mxu0 %v522
    %861 = vmatpush1.msra.mxu0 %v521
    %862 = vmatprep.subr.mxu0 %v538
    %863 = vmatpush1.msra.mxu0 %v537
    %864 = vmatprep.subr.mxu0 %v554
    %865 = vmatpush1.msra.mxu0 %v553
    %866 = vmatprep.subr.mxu0 %v570
    %867 = vmatpush1.msra.mxu0 %v569
    %868 = vmatprep.subr.mxu0 %v586
    %869 = vmatpush1.msra.mxu0 %v585
    %870 = vmatprep.subr.mxu0 %v602
    %871 = vmatpush1.msra.mxu0 %v601
    %872 = vmatprep.subr.mxu0 %v618
    %873 = vmatpush1.msra.mxu0 %v617
    %874 = vmatprep.subr.mxu0 %v634
    %875 = vmatpush1.msra.mxu0 %v633
    %876 = vmatprep.subr.mxu0 %v650
    %877 = vmatpush1.msra.mxu0 %v649
    %878 = vmatprep.subr.mxu0 %v666
    %879 = vmatpush1.msra.mxu0 %v665
    %880 = vmatprep.subr.mxu0 %v682
    %881 = vmatpush1.msra.mxu0 %v681
    %882 = vmatprep.subr.mxu0 0.0
    %883 = vmatpush1.msra.mxu0 0.0
    %884 = vmatprep.subr.mxu0 0.0
    %885 = vmatpush1.msra.mxu0 0.0
    %886 = vmatprep.subr.mxu0 0.0
    %887 = vmatpush1.msra.mxu0 0.0
    %888 = vmatprep.subr.mxu0 0.0
    %889 = vmatpush1.msra.mxu0 0.0
    %890 = vmatprep.subr.mxu0 0.0
    %891 = vmatpush1.msra.mxu0 0.0
    %892 = vmatprep.subr.mxu0 0.0
    %893 = vmatpush1.msra.mxu0 0.0
    %894 = vmatprep.subr.mxu0 0.0
    %895 = vmatpush1.msra.mxu0 0.0
    %896 = vmatprep.subr.mxu0 0.0
    %897 = vmatpush1.msra.mxu0 0.0
    %898 = vmatprep.subr.mxu0 0.0
    %899 = vmatpush1.msra.mxu0 0.0
    %900 = vmatprep.subr.mxu0 0.0
    %901 = vmatpush1.msra.mxu0 0.0
    %902 = vmatprep.subr.mxu0 0.0
    %903 = vmatpush1.msra.mxu0 0.0
    %904 = vmatprep.subr.mxu0 0.0
    %905 = vmatpush1.msra.mxu0 0.0
    %906 = vmatprep.subr.mxu0 0.0
    %907 = vmatpush1.msra.mxu0 0.0
    %908 = vmatprep.subr.mxu0 0.0
    %909 = vmatpush1.msra.mxu0 0.0
    %910 = vmatprep.subr.mxu0 0.0
    %911 = vmatpush1.msra.mxu0 0.0
    %912 = vmatprep.subr.mxu0 0.0
    %913 = vmatpush1.msra.mxu0 0.0
    %914 = vmatprep.mubr.f32.mxu0 0.0
    %915 = vmatmul.mubr.f32.gmra.mrb[0].mxu0 %v438
    %v916 = vpop.f32.mrb[0].mxu0
    %v917 = vadd.f32 %v710, %v916
    %v918 = vpop.f32.mrb[0].mxu0
    %v919 = vadd.f32 %v714, %v918
    %920 = vdwg.mxu0
    %921 = vmatprep.subr.mxu0 %v444
    %922 = vmatpush1.msra.mxu0 %v443
    %923 = vmatprep.subr.mxu0 %v460
    %924 = vmatpush1.msra.mxu0 %v459
    %925 = vmatprep.subr.mxu0 %v476
    %926 = vmatpush1.msra.mxu0 %v475
    %927 = vmatprep.subr.mxu0 %v492
    %928 = vmatpush1.msra.mxu0 %v491
    %929 = vmatprep.subr.mxu0 %v508
    %930 = vmatpush1.msra.mxu0 %v507
    %931 = vmatprep.subr.mxu0 %v524
    %932 = vmatpush1.msra.mxu0 %v523
    %933 = vmatprep.subr.mxu0 %v540
    %934 = vmatpush1.msra.mxu0 %v539
    %935 = vmatprep.subr.mxu0 %v556
    %936 = vmatpush1.msra.mxu0 %v555
    %937 = vmatprep.subr.mxu0 %v572
    %938 = vmatpush1.msra.mxu0 %v571
    %939 = vmatprep.subr.mxu0 %v588
    %940 = vmatpush1.msra.mxu0 %v587
    %941 = vmatprep.subr.mxu0 %v604
    %942 = vmatpush1.msra.mxu0 %v603
    %943 = vmatprep.subr.mxu0 %v620
    %944 = vmatpush1.msra.mxu0 %v619
    %945 = vmatprep.subr.mxu0 %v636
    %946 = vmatpush1.msra.mxu0 %v635
    %947 = vmatprep.subr.mxu0 %v652
    %948 = vmatpush1.msra.mxu0 %v651
    %949 = vmatprep.subr.mxu0 %v668
    %950 = vmatpush1.msra.mxu0 %v667
    %951 = vmatprep.subr.mxu0 %v684
    %952 = vmatpush1.msra.mxu0 %v683
    %953 = vmatprep.subr.mxu0 0.0
    %954 = vmatpush1.msra.mxu0 0.0
    %955 = vmatprep.subr.mxu0 0.0
    %956 = vmatpush1.msra.mxu0 0.0
    %957 = vmatprep.subr.mxu0 0.0
    %958 = vmatpush1.msra.mxu0 0.0
    %959 = vmatprep.subr.mxu0 0.0
    %960 = vmatpush1.msra.mxu0 0.0
    %961 = vmatprep.subr.mxu0 0.0
    %962 = vmatpush1.msra.mxu0 0.0
    %963 = vmatprep.subr.mxu0 0.0
    %964 = vmatpush1.msra.mxu0 0.0
    %965 = vmatprep.subr.mxu0 0.0
    %966 = vmatpush1.msra.mxu0 0.0
    %967 = vmatprep.subr.mxu0 0.0
    %968 = vmatpush1.msra.mxu0 0.0
    %969 = vmatprep.subr.mxu0 0.0
    %970 = vmatpush1.msra.mxu0 0.0
    %971 = vmatprep.subr.mxu0 0.0
    %972 = vmatpush1.msra.mxu0 0.0
    %973 = vmatprep.subr.mxu0 0.0
    %974 = vmatpush1.msra.mxu0 0.0
    %975 = vmatprep.subr.mxu0 0.0
    %976 = vmatpush1.msra.mxu0 0.0
    %977 = vmatprep.subr.mxu0 0.0
    %978 = vmatpush1.msra.mxu0 0.0
    %979 = vmatprep.subr.mxu0 0.0
    %980 = vmatpush1.msra.mxu0 0.0
    %981 = vmatprep.subr.mxu0 0.0
    %982 = vmatpush1.msra.mxu0 0.0
    %983 = vmatprep.subr.mxu0 0.0
    %984 = vmatpush1.msra.mxu0 0.0
    %985 = vmatprep.mubr.f32.mxu0 0.0
    %986 = vmatmul.mubr.f32.gmra.mrb[0].mxu0 %v438
    %v987 = vpop.f32.mrb[0].mxu0
    %v988 = vadd.f32 %v718, %v987
    %v989 = vpop.f32.mrb[0].mxu0
    %v990 = vadd.f32 %v722, %v989
    %991 = vdwg.mxu0
    %992 = vmatprep.subr.mxu0 %v446
    %993 = vmatpush1.msra.mxu0 %v445
    %994 = vmatprep.subr.mxu0 %v462
    %995 = vmatpush1.msra.mxu0 %v461
    %996 = vmatprep.subr.mxu0 %v478
    %997 = vmatpush1.msra.mxu0 %v477
    %998 = vmatprep.subr.mxu0 %v494
    %999 = vmatpush1.msra.mxu0 %v493
    %1000 = vmatprep.subr.mxu0 %v510
    %1001 = vmatpush1.msra.mxu0 %v509
    %1002 = vmatprep.subr.mxu0 %v526
    %1003 = vmatpush1.msra.mxu0 %v525
    %1004 = vmatprep.subr.mxu0 %v542
    %1005 = vmatpush1.msra.mxu0 %v541
    %1006 = vmatprep.subr.mxu0 %v558
    %1007 = vmatpush1.msra.mxu0 %v557
    %1008 = vmatprep.subr.mxu0 %v574
    %1009 = vmatpush1.msra.mxu0 %v573
    %1010 = vmatprep.subr.mxu0 %v590
    %1011 = vmatpush1.msra.mxu0 %v589
    %1012 = vmatprep.subr.mxu0 %v606
    %1013 = vmatpush1.msra.mxu0 %v605
    %1014 = vmatprep.subr.mxu0 %v622
    %1015 = vmatpush1.msra.mxu0 %v621
    %1016 = vmatprep.subr.mxu0 %v638
    %1017 = vmatpush1.msra.mxu0 %v637
    %1018 = vmatprep.subr.mxu0 %v654
    %1019 = vmatpush1.msra.mxu0 %v653
    %1020 = vmatprep.subr.mxu0 %v670
    %1021 = vmatpush1.msra.mxu0 %v669
    %1022 = vmatprep.subr.mxu0 %v686
    %1023 = vmatpush1.msra.mxu0 %v685
    %1024 = vmatprep.subr.mxu0 0.0
    %1025 = vmatpush1.msra.mxu0 0.0
    %1026 = vmatprep.subr.mxu0 0.0
    %1027 = vmatpush1.msra.mxu0 0.0
    %1028 = vmatprep.subr.mxu0 0.0
    %1029 = vmatpush1.msra.mxu0 0.0
    %1030 = vmatprep.subr.mxu0 0.0
    %1031 = vmatpush1.msra.mxu0 0.0
    %1032 = vmatprep.subr.mxu0 0.0
    %1033 = vmatpush1.msra.mxu0 0.0
    %1034 = vmatprep.subr.mxu0 0.0
    %1035 = vmatpush1.msra.mxu0 0.0
    %1036 = vmatprep.subr.mxu0 0.0
    %1037 = vmatpush1.msra.mxu0 0.0
    %1038 = vmatprep.subr.mxu0 0.0
    %1039 = vmatpush1.msra.mxu0 0.0
    %1040 = vmatprep.subr.mxu0 0.0
    %1041 = vmatpush1.msra.mxu0 0.0
    %1042 = vmatprep.subr.mxu0 0.0
    %1043 = vmatpush1.msra.mxu0 0.0
    %1044 = vmatprep.subr.mxu0 0.0
    %1045 = vmatpush1.msra.mxu0 0.0
    %1046 = vmatprep.subr.mxu0 0.0
    %1047 = vmatpush1.msra.mxu0 0.0
    %1048 = vmatprep.subr.mxu0 0.0
    %1049 = vmatpush1.msra.mxu0 0.0
    %1050 = vmatprep.subr.mxu0 0.0
    %1051 = vmatpush1.msra.mxu0 0.0
    %1052 = vmatprep.subr.mxu0 0.0
    %1053 = vmatpush1.msra.mxu0 0.0
    %1054 = vmatprep.subr.mxu0 0.0
    %1055 = vmatpush1.msra.mxu0 0.0
    %1056 = vmatprep.mubr.f32.mxu0 0.0
    %1057 = vmatmul.mubr.f32.gmra.mrb[0].mxu0 %v438
    %v1058 = vpop.f32.mrb[0].mxu0
    %v1059 = vadd.f32 %v726, %v1058
    %v1060 = vpop.f32.mrb[0].mxu0
    %v1061 = vadd.f32 %v730, %v1060
    %1062 = vdwg.mxu0
    %1063 = vmatprep.subr.mxu0 %v448
    %1064 = vmatpush1.msra.mxu0 %v447
    %1065 = vmatprep.subr.mxu0 %v464
    %1066 = vmatpush1.msra.mxu0 %v463
    %1067 = vmatprep.subr.mxu0 %v480
    %1068 = vmatpush1.msra.mxu0 %v479
    %1069 = vmatprep.subr.mxu0 %v496
    %1070 = vmatpush1.msra.mxu0 %v495
    %1071 = vmatprep.subr.mxu0 %v512
    %1072 = vmatpush1.msra.mxu0 %v511
    %1073 = vmatprep.subr.mxu0 %v528
    %1074 = vmatpush1.msra.mxu0 %v527
    %1075 = vmatprep.subr.mxu0 %v544
    %1076 = vmatpush1.msra.mxu0 %v543
    %1077 = vmatprep.subr.mxu0 %v560
    %1078 = vmatpush1.msra.mxu0 %v559
    %1079 = vmatprep.subr.mxu0 %v576
    %1080 = vmatpush1.msra.mxu0 %v575
    %1081 = vmatprep.subr.mxu0 %v592
    %1082 = vmatpush1.msra.mxu0 %v591
    %1083 = vmatprep.subr.mxu0 %v608
    %1084 = vmatpush1.msra.mxu0 %v607
    %1085 = vmatprep.subr.mxu0 %v624
    %1086 = vmatpush1.msra.mxu0 %v623
    %1087 = vmatprep.subr.mxu0 %v640
    %1088 = vmatpush1.msra.mxu0 %v639
    %1089 = vmatprep.subr.mxu0 %v656
    %1090 = vmatpush1.msra.mxu0 %v655
    %1091 = vmatprep.subr.mxu0 %v672
    %1092 = vmatpush1.msra.mxu0 %v671
    %1093 = vmatprep.subr.mxu0 %v688
    %1094 = vmatpush1.msra.mxu0 %v687
    %1095 = vmatprep.subr.mxu0 0.0
    %1096 = vmatpush1.msra.mxu0 0.0
    %1097 = vmatprep.subr.mxu0 0.0
    %1098 = vmatpush1.msra.mxu0 0.0
    %1099 = vmatprep.subr.mxu0 0.0
    %1100 = vmatpush1.msra.mxu0 0.0
    %1101 = vmatprep.subr.mxu0 0.0
    %1102 = vmatpush1.msra.mxu0 0.0
    %1103 = vmatprep.subr.mxu0 0.0
    %1104 = vmatpush1.msra.mxu0 0.0
    %1105 = vmatprep.subr.mxu0 0.0
    %1106 = vmatpush1.msra.mxu0 0.0
    %1107 = vmatprep.subr.mxu0 0.0
    %1108 = vmatpush1.msra.mxu0 0.0
    %1109 = vmatprep.subr.mxu0 0.0
    %1110 = vmatpush1.msra.mxu0 0.0
    %1111 = vmatprep.subr.mxu0 0.0
    %1112 = vmatpush1.msra.mxu0 0.0
    %1113 = vmatprep.subr.mxu0 0.0
    %1114 = vmatpush1.msra.mxu0 0.0
    %1115 = vmatprep.subr.mxu0 0.0
    %1116 = vmatpush1.msra.mxu0 0.0
    %1117 = vmatprep.subr.mxu0 0.0
    %1118 = vmatpush1.msra.mxu0 0.0
    %1119 = vmatprep.subr.mxu0 0.0
    %1120 = vmatpush1.msra.mxu0 0.0
    %1121 = vmatprep.subr.mxu0 0.0
    %1122 = vmatpush1.msra.mxu0 0.0
    %1123 = vmatprep.subr.mxu0 0.0
    %1124 = vmatpush1.msra.mxu0 0.0
    %1125 = vmatprep.subr.mxu0 0.0
    %1126 = vmatpush1.msra.mxu0 0.0
    %1127 = vmatprep.mubr.f32.mxu0 0.0
    %1128 = vmatmul.mubr.f32.gmra.mrb[0].mxu0 %v438
    %v1129 = vpop.f32.mrb[0].mxu0
    %v1130 = vadd.f32 %v734, %v1129
    %v1131 = vpop.f32.mrb[0].mxu0
    %v1132 = vadd.f32 %v738, %v1131
    %1133 = vdwg.mxu0
    %1134 = vmatprep.subr.mxu0 %v450
    %1135 = vmatpush1.msra.mxu0 %v449
    %1136 = vmatprep.subr.mxu0 %v466
    %1137 = vmatpush1.msra.mxu0 %v465
    %1138 = vmatprep.subr.mxu0 %v482
    %1139 = vmatpush1.msra.mxu0 %v481
    %1140 = vmatprep.subr.mxu0 %v498
    %1141 = vmatpush1.msra.mxu0 %v497
    %1142 = vmatprep.subr.mxu0 %v514
    %1143 = vmatpush1.msra.mxu0 %v513
    %1144 = vmatprep.subr.mxu0 %v530
    %1145 = vmatpush1.msra.mxu0 %v529
    %1146 = vmatprep.subr.mxu0 %v546
    %1147 = vmatpush1.msra.mxu0 %v545
    %1148 = vmatprep.subr.mxu0 %v562
    %1149 = vmatpush1.msra.mxu0 %v561
    %1150 = vmatprep.subr.mxu0 %v578
    %1151 = vmatpush1.msra.mxu0 %v577
    %1152 = vmatprep.subr.mxu0 %v594
    %1153 = vmatpush1.msra.mxu0 %v593
    %1154 = vmatprep.subr.mxu0 %v610
    %1155 = vmatpush1.msra.mxu0 %v609
    %1156 = vmatprep.subr.mxu0 %v626
    %1157 = vmatpush1.msra.mxu0 %v625
    %1158 = vmatprep.subr.mxu0 %v642
    %1159 = vmatpush1.msra.mxu0 %v641
    %1160 = vmatprep.subr.mxu0 %v658
    %1161 = vmatpush1.msra.mxu0 %v657
    %1162 = vmatprep.subr.mxu0 %v674
    %1163 = vmatpush1.msra.mxu0 %v673
    %1164 = vmatprep.subr.mxu0 %v690
    %1165 = vmatpush1.msra.mxu0 %v689
    %1166 = vmatprep.subr.mxu0 0.0
    %1167 = vmatpush1.msra.mxu0 0.0
    %1168 = vmatprep.subr.mxu0 0.0
    %1169 = vmatpush1.msra.mxu0 0.0
    %1170 = vmatprep.subr.mxu0 0.0
    %1171 = vmatpush1.msra.mxu0 0.0
    %1172 = vmatprep.subr.mxu0 0.0
    %1173 = vmatpush1.msra.mxu0 0.0
    %1174 = vmatprep.subr.mxu0 0.0
    %1175 = vmatpush1.msra.mxu0 0.0
    %1176 = vmatprep.subr.mxu0 0.0
    %1177 = vmatpush1.msra.mxu0 0.0
    %1178 = vmatprep.subr.mxu0 0.0
    %1179 = vmatpush1.msra.mxu0 0.0
    %1180 = vmatprep.subr.mxu0 0.0
    %1181 = vmatpush1.msra.mxu0 0.0
    %1182 = vmatprep.subr.mxu0 0.0
    %1183 = vmatpush1.msra.mxu0 0.0
    %1184 = vmatprep.subr.mxu0 0.0
    %1185 = vmatpush1.msra.mxu0 0.0
    %1186 = vmatprep.subr.mxu0 0.0
    %1187 = vmatpush1.msra.mxu0 0.0
    %1188 = vmatprep.subr.mxu0 0.0
    %1189 = vmatpush1.msra.mxu0 0.0
    %1190 = vmatprep.subr.mxu0 0.0
    %1191 = vmatpush1.msra.mxu0 0.0
    %1192 = vmatprep.subr.mxu0 0.0
    %1193 = vmatpush1.msra.mxu0 0.0
    %1194 = vmatprep.subr.mxu0 0.0
    %1195 = vmatpush1.msra.mxu0 0.0
    %1196 = vmatprep.subr.mxu0 0.0
    %1197 = vmatpush1.msra.mxu0 0.0
    %1198 = vmatprep.mubr.f32.mxu0 0.0
    %1199 = vmatmul.mubr.f32.gmra.mrb[0].mxu0 %v438
    %v1200 = vpop.f32.mrb[0].mxu0
    %v1201 = vadd.f32 %v742, %v1200
    %v1202 = vpop.f32.mrb[0].mxu0
    %v1203 = vadd.f32 %v746, %v1202
    %1204 = vdwg.mxu0
    %1205 = vmatprep.subr.mxu0 %v452
    %1206 = vmatpush1.msra.mxu0 %v451
    %1207 = vmatprep.subr.mxu0 %v468
    %1208 = vmatpush1.msra.mxu0 %v467
    %1209 = vmatprep.subr.mxu0 %v484
    %1210 = vmatpush1.msra.mxu0 %v483
    %1211 = vmatprep.subr.mxu0 %v500
    %1212 = vmatpush1.msra.mxu0 %v499
    %1213 = vmatprep.subr.mxu0 %v516
    %1214 = vmatpush1.msra.mxu0 %v515
    %1215 = vmatprep.subr.mxu0 %v532
    %1216 = vmatpush1.msra.mxu0 %v531
    %1217 = vmatprep.subr.mxu0 %v548
    %1218 = vmatpush1.msra.mxu0 %v547
    %1219 = vmatprep.subr.mxu0 %v564
    %1220 = vmatpush1.msra.mxu0 %v563
    %1221 = vmatprep.subr.mxu0 %v580
    %1222 = vmatpush1.msra.mxu0 %v579
    %1223 = vmatprep.subr.mxu0 %v596
    %1224 = vmatpush1.msra.mxu0 %v595
    %1225 = vmatprep.subr.mxu0 %v612
    %1226 = vmatpush1.msra.mxu0 %v611
    %1227 = vmatprep.subr.mxu0 %v628
    %1228 = vmatpush1.msra.mxu0 %v627
    %1229 = vmatprep.subr.mxu0 %v644
    %1230 = vmatpush1.msra.mxu0 %v643
    %1231 = vmatprep.subr.mxu0 %v660
    %1232 = vmatpush1.msra.mxu0 %v659
    %1233 = vmatprep.subr.mxu0 %v676
    %1234 = vmatpush1.msra.mxu0 %v675
    %1235 = vmatprep.subr.mxu0 %v692
    %1236 = vmatpush1.msra.mxu0 %v691
    %1237 = vmatprep.subr.mxu0 0.0
    %1238 = vmatpush1.msra.mxu0 0.0
    %1239 = vmatprep.subr.mxu0 0.0
    %1240 = vmatpush1.msra.mxu0 0.0
    %1241 = vmatprep.subr.mxu0 0.0
    %1242 = vmatpush1.msra.mxu0 0.0
    %1243 = vmatprep.subr.mxu0 0.0
    %1244 = vmatpush1.msra.mxu0 0.0
    %1245 = vmatprep.subr.mxu0 0.0
    %1246 = vmatpush1.msra.mxu0 0.0
    %1247 = vmatprep.subr.mxu0 0.0
    %1248 = vmatpush1.msra.mxu0 0.0
    %1249 = vmatprep.subr.mxu0 0.0
    %1250 = vmatpush1.msra.mxu0 0.0
    %1251 = vmatprep.subr.mxu0 0.0
    %1252 = vmatpush1.msra.mxu0 0.0
    %1253 = vmatprep.subr.mxu0 0.0
    %1254 = vmatpush1.msra.mxu0 0.0
    %1255 = vmatprep.subr.mxu0 0.0
    %1256 = vmatpush1.msra.mxu0 0.0
    %1257 = vmatprep.subr.mxu0 0.0
    %1258 = vmatpush1.msra.mxu0 0.0
    %1259 = vmatprep.subr.mxu0 0.0
    %1260 = vmatpush1.msra.mxu0 0.0
    %1261 = vmatprep.subr.mxu0 0.0
    %1262 = vmatpush1.msra.mxu0 0.0
    %1263 = vmatprep.subr.mxu0 0.0
    %1264 = vmatpush1.msra.mxu0 0.0
    %1265 = vmatprep.subr.mxu0 0.0
    %1266 = vmatpush1.msra.mxu0 0.0
    %1267 = vmatprep.subr.mxu0 0.0
    %1268 = vmatpush1.msra.mxu0 0.0
    %1269 = vmatprep.mubr.f32.mxu0 0.0
    %1270 = vmatmul.mubr.f32.gmra.mrb[0].mxu0 %v438
    %v1271 = vpop.f32.mrb[0].mxu0
    %v1272 = vadd.f32 %v750, %v1271
    %v1273 = vpop.f32.mrb[0].mxu0
    %v1274 = vadd.f32 %v754, %v1273
    %1275 = vdwg.mxu0
    %1276 = vmatprep.subr.mxu0 %v454
    %1277 = vmatpush1.msra.mxu0 %v453
    %1278 = vmatprep.subr.mxu0 %v470
    %1279 = vmatpush1.msra.mxu0 %v469
    %1280 = vmatprep.subr.mxu0 %v486
    %1281 = vmatpush1.msra.mxu0 %v485
    %1282 = vmatprep.subr.mxu0 %v502
    %1283 = vmatpush1.msra.mxu0 %v501
    %1284 = vmatprep.subr.mxu0 %v518
    %1285 = vmatpush1.msra.mxu0 %v517
    %1286 = vmatprep.subr.mxu0 %v534
    %1287 = vmatpush1.msra.mxu0 %v533
    %1288 = vmatprep.subr.mxu0 %v550
    %1289 = vmatpush1.msra.mxu0 %v549
    %1290 = vmatprep.subr.mxu0 %v566
    %1291 = vmatpush1.msra.mxu0 %v565
    %1292 = vmatprep.subr.mxu0 %v582
    %1293 = vmatpush1.msra.mxu0 %v581
    %1294 = vmatprep.subr.mxu0 %v598
    %1295 = vmatpush1.msra.mxu0 %v597
    %1296 = vmatprep.subr.mxu0 %v614
    %1297 = vmatpush1.msra.mxu0 %v613
    %1298 = vmatprep.subr.mxu0 %v630
    %1299 = vmatpush1.msra.mxu0 %v629
    %1300 = vmatprep.subr.mxu0 %v646
    %1301 = vmatpush1.msra.mxu0 %v645
    %1302 = vmatprep.subr.mxu0 %v662
    %1303 = vmatpush1.msra.mxu0 %v661
    %1304 = vmatprep.subr.mxu0 %v678
    %1305 = vmatpush1.msra.mxu0 %v677
    %1306 = vmatprep.subr.mxu0 %v694
    %1307 = vmatpush1.msra.mxu0 %v693
    %1308 = vmatprep.subr.mxu0 0.0
    %1309 = vmatpush1.msra.mxu0 0.0
    %1310 = vmatprep.subr.mxu0 0.0
    %1311 = vmatpush1.msra.mxu0 0.0
    %1312 = vmatprep.subr.mxu0 0.0
    %1313 = vmatpush1.msra.mxu0 0.0
    %1314 = vmatprep.subr.mxu0 0.0
    %1315 = vmatpush1.msra.mxu0 0.0
    %1316 = vmatprep.subr.mxu0 0.0
    %1317 = vmatpush1.msra.mxu0 0.0
    %1318 = vmatprep.subr.mxu0 0.0
    %1319 = vmatpush1.msra.mxu0 0.0
    %1320 = vmatprep.subr.mxu0 0.0
    %1321 = vmatpush1.msra.mxu0 0.0
    %1322 = vmatprep.subr.mxu0 0.0
    %1323 = vmatpush1.msra.mxu0 0.0
    %1324 = vmatprep.subr.mxu0 0.0
    %1325 = vmatpush1.msra.mxu0 0.0
    %1326 = vmatprep.subr.mxu0 0.0
    %1327 = vmatpush1.msra.mxu0 0.0
    %1328 = vmatprep.subr.mxu0 0.0
    %1329 = vmatpush1.msra.mxu0 0.0
    %1330 = vmatprep.subr.mxu0 0.0
    %1331 = vmatpush1.msra.mxu0 0.0
    %1332 = vmatprep.subr.mxu0 0.0
    %1333 = vmatpush1.msra.mxu0 0.0
    %1334 = vmatprep.subr.mxu0 0.0
    %1335 = vmatpush1.msra.mxu0 0.0
    %1336 = vmatprep.subr.mxu0 0.0
    %1337 = vmatpush1.msra.mxu0 0.0
    %1338 = vmatprep.subr.mxu0 0.0
    %1339 = vmatpush1.msra.mxu0 0.0
    %1340 = vmatprep.mubr.f32.mxu0 0.0
    %1341 = vmatmul.mubr.f32.gmra.mrb[0].mxu0 %v438
    %v1342 = vpop.f32.mrb[0].mxu0
    %v1343 = vadd.f32 %v758, %v1342
    %v1344 = vpop.f32.mrb[0].mxu0
    %v1345 = vadd.f32 %v762, %v1344
    %1346 = vdwg.mxu0
    %v1347 = vmul.f32 %v846, 0.5
    %v1348 = vmul.f32 %v848, 0.5
    %v1349 = vmul.f32 %v917, 0.5
    %v1350 = vmul.f32 %v919, 0.5
    %v1351 = vmul.f32 %v988, 0.5
    %v1352 = vmul.f32 %v990, 0.5
    %v1353 = vmul.f32 %v1059, 0.5
    %v1354 = vmul.f32 %v1061, 0.5
    %v1355 = vmul.f32 %v1130, 0.5
    %v1356 = vmul.f32 %v1132, 0.5
    %v1357 = vmul.f32 %v1201, 0.5
    %v1358 = vmul.f32 %v1203, 0.5
    %v1359 = vmul.f32 %v1272, 0.5
    %v1360 = vmul.f32 %v1274, 0.5
    %v1361 = vmul.f32 %v1343, 0.5
    %v1362 = vmul.f32 %v1345, 0.5
    %v1363 = vmul.f32 %v846, 0.70710677
    %v1364 = vmul.f32 %v848, 0.70710677
    %v1365 = vmul.f32 %v917, 0.70710677
    %v1366 = vmul.f32 %v919, 0.70710677
    %v1367 = vmul.f32 %v988, 0.70710677
    %v1368 = vmul.f32 %v990, 0.70710677
    %v1369 = vmul.f32 %v1059, 0.70710677
    %v1370 = vmul.f32 %v1061, 0.70710677
    %v1371 = vmul.f32 %v1130, 0.70710677
    %v1372 = vmul.f32 %v1132, 0.70710677
    %v1373 = vmul.f32 %v1201, 0.70710677
    %v1374 = vmul.f32 %v1203, 0.70710677
    %v1375 = vmul.f32 %v1272, 0.70710677
    %v1376 = vmul.f32 %v1274, 0.70710677
    %v1377 = vmul.f32 %v1343, 0.70710677
    %v1378 = vmul.f32 %v1345, 0.70710677
    %vm1379 = vcmp.ge.f32.partialorder %v1363, 0.0
    %vm1380 = vcmp.ge.f32.partialorder %v1364, 0.0
    %vm1381 = vcmp.ge.f32.partialorder %v1365, 0.0
    %vm1382 = vcmp.ge.f32.partialorder %v1366, 0.0
    %vm1383 = vcmp.ge.f32.partialorder %v1367, 0.0
    %vm1384 = vcmp.ge.f32.partialorder %v1368, 0.0
    %vm1385 = vcmp.ge.f32.partialorder %v1369, 0.0
    %vm1386 = vcmp.ge.f32.partialorder %v1370, 0.0
    %vm1387 = vcmp.ge.f32.partialorder %v1371, 0.0
    %vm1388 = vcmp.ge.f32.partialorder %v1372, 0.0
    %vm1389 = vcmp.ge.f32.partialorder %v1373, 0.0
    %vm1390 = vcmp.ge.f32.partialorder %v1374, 0.0
    %vm1391 = vcmp.ge.f32.partialorder %v1375, 0.0
    %vm1392 = vcmp.ge.f32.partialorder %v1376, 0.0
    %vm1393 = vcmp.ge.f32.partialorder %v1377, 0.0
    %vm1394 = vcmp.ge.f32.partialorder %v1378, 0.0
    %v1395 = vsel %vm1379, 1.0, -1.0
    %v1396 = vsel %vm1380, 1.0, -1.0
    %v1397 = vsel %vm1381, 1.0, -1.0
    %v1398 = vsel %vm1382, 1.0, -1.0
    %v1399 = vsel %vm1383, 1.0, -1.0
    %v1400 = vsel %vm1384, 1.0, -1.0
    %v1401 = vsel %vm1385, 1.0, -1.0
    %v1402 = vsel %vm1386, 1.0, -1.0
    %v1403 = vsel %vm1387, 1.0, -1.0
    %v1404 = vsel %vm1388, 1.0, -1.0
    %v1405 = vsel %vm1389, 1.0, -1.0
    %v1406 = vsel %vm1390, 1.0, -1.0
    %v1407 = vsel %vm1391, 1.0, -1.0
    %v1408 = vsel %vm1392, 1.0, -1.0
    %v1409 = vsel %vm1393, 1.0, -1.0
    %v1410 = vsel %vm1394, 1.0, -1.0
    %v1411 = vand.u32 2147483647, %v1363
    %v1412 = vand.u32 2147483647, %v1364
    %v1413 = vand.u32 2147483647, %v1365
    %v1414 = vand.u32 2147483647, %v1366
    %v1415 = vand.u32 2147483647, %v1367
    %v1416 = vand.u32 2147483647, %v1368
    %v1417 = vand.u32 2147483647, %v1369
    %v1418 = vand.u32 2147483647, %v1370
    %v1419 = vand.u32 2147483647, %v1371
    %v1420 = vand.u32 2147483647, %v1372
    %v1421 = vand.u32 2147483647, %v1373
    %v1422 = vand.u32 2147483647, %v1374
    %v1423 = vand.u32 2147483647, %v1375
    %v1424 = vand.u32 2147483647, %v1376
    %v1425 = vand.u32 2147483647, %v1377
    %v1426 = vand.u32 2147483647, %v1378
    %v1427 = vmul.f32 %v1411, 0.3275911
    %v1428 = vmul.f32 %v1412, 0.3275911
    %v1429 = vmul.f32 %v1413, 0.3275911
    %v1430 = vmul.f32 %v1414, 0.3275911
    %v1431 = vmul.f32 %v1415, 0.3275911
    %v1432 = vmul.f32 %v1416, 0.3275911
    %v1433 = vmul.f32 %v1417, 0.3275911
    %v1434 = vmul.f32 %v1418, 0.3275911
    %v1435 = vmul.f32 %v1419, 0.3275911
    %v1436 = vmul.f32 %v1420, 0.3275911
    %v1437 = vmul.f32 %v1421, 0.3275911
    %v1438 = vmul.f32 %v1422, 0.3275911
    %v1439 = vmul.f32 %v1423, 0.3275911
    %v1440 = vmul.f32 %v1424, 0.3275911
    %v1441 = vmul.f32 %v1425, 0.3275911
    %v1442 = vmul.f32 %v1426, 0.3275911
    %v1443 = vadd.f32 %v1427, 1.0
    %v1444 = vadd.f32 %v1428, 1.0
    %v1445 = vadd.f32 %v1429, 1.0
    %v1446 = vadd.f32 %v1430, 1.0
    %v1447 = vadd.f32 %v1431, 1.0
    %v1448 = vadd.f32 %v1432, 1.0
    %v1449 = vadd.f32 %v1433, 1.0
    %v1450 = vadd.f32 %v1434, 1.0
    %v1451 = vadd.f32 %v1435, 1.0
    %v1452 = vadd.f32 %v1436, 1.0
    %v1453 = vadd.f32 %v1437, 1.0
    %v1454 = vadd.f32 %v1438, 1.0
    %v1455 = vadd.f32 %v1439, 1.0
    %v1456 = vadd.f32 %v1440, 1.0
    %v1457 = vadd.f32 %v1441, 1.0
    %v1458 = vadd.f32 %v1442, 1.0
    %v1459 = vrcp.pop %v1443
    %v1460 = vrcp.pop %v1444
    %v1461 = vrcp.pop %v1445
    %v1462 = vrcp.pop %v1446
    %v1463 = vrcp.pop %v1447
    %v1464 = vrcp.pop %v1448
    %v1465 = vrcp.pop %v1449
    %v1466 = vrcp.pop %v1450
    %v1467 = vrcp.pop %v1451
    %v1468 = vrcp.pop %v1452
    %v1469 = vrcp.pop %v1453
    %v1470 = vrcp.pop %v1454
    %v1471 = vrcp.pop %v1455
    %v1472 = vrcp.pop %v1456
    %v1473 = vrcp.pop %v1457
    %v1474 = vrcp.pop %v1458
    %v1475 = vmul.f32 %v1443, %v1459
    %v1476 = vmul.f32 %v1444, %v1460
    %v1477 = vmul.f32 %v1445, %v1461
    %v1478 = vmul.f32 %v1446, %v1462
    %v1479 = vmul.f32 %v1447, %v1463
    %v1480 = vmul.f32 %v1448, %v1464
    %v1481 = vmul.f32 %v1449, %v1465
    %v1482 = vmul.f32 %v1450, %v1466
    %v1483 = vmul.f32 %v1451, %v1467
    %v1484 = vmul.f32 %v1452, %v1468
    %v1485 = vmul.f32 %v1453, %v1469
    %v1486 = vmul.f32 %v1454, %v1470
    %v1487 = vmul.f32 %v1455, %v1471
    %v1488 = vmul.f32 %v1456, %v1472
    %v1489 = vmul.f32 %v1457, %v1473
    %v1490 = vmul.f32 %v1458, %v1474
    %v1491 = vsub.f32 2.0, %v1475
    %v1492 = vsub.f32 2.0, %v1476
    %v1493 = vsub.f32 2.0, %v1477
    %v1494 = vsub.f32 2.0, %v1478
    %v1495 = vsub.f32 2.0, %v1479
    %v1496 = vsub.f32 2.0, %v1480
    %v1497 = vsub.f32 2.0, %v1481
    %v1498 = vsub.f32 2.0, %v1482
    %v1499 = vsub.f32 2.0, %v1483
    %v1500 = vsub.f32 2.0, %v1484
    %v1501 = vsub.f32 2.0, %v1485
    %v1502 = vsub.f32 2.0, %v1486
    %v1503 = vsub.f32 2.0, %v1487
    %v1504 = vsub.f32 2.0, %v1488
    %v1505 = vsub.f32 2.0, %v1489
    %v1506 = vsub.f32 2.0, %v1490
    %v1507 = vmul.f32 %v1459, %v1491
    %v1508 = vmul.f32 %v1460, %v1492
    %v1509 = vmul.f32 %v1461, %v1493
    %v1510 = vmul.f32 %v1462, %v1494
    %v1511 = vmul.f32 %v1463, %v1495
    %v1512 = vmul.f32 %v1464, %v1496
    %v1513 = vmul.f32 %v1465, %v1497
    %v1514 = vmul.f32 %v1466, %v1498
    %v1515 = vmul.f32 %v1467, %v1499
    %v1516 = vmul.f32 %v1468, %v1500
    %v1517 = vmul.f32 %v1469, %v1501
    %v1518 = vmul.f32 %v1470, %v1502
    %v1519 = vmul.f32 %v1471, %v1503
    %v1520 = vmul.f32 %v1472, %v1504
    %v1521 = vmul.f32 %v1473, %v1505
    %v1522 = vmul.f32 %v1474, %v1506
    %v1523 = vmul.f32 %v1507, 1.0614054
    %v1524 = vmul.f32 %v1508, 1.0614054
    %v1525 = vmul.f32 %v1509, 1.0614054
    %v1526 = vmul.f32 %v1510, 1.0614054
    %v1527 = vmul.f32 %v1511, 1.0614054
    %v1528 = vmul.f32 %v1512, 1.0614054
    %v1529 = vmul.f32 %v1513, 1.0614054
    %v1530 = vmul.f32 %v1514, 1.0614054
    %v1531 = vmul.f32 %v1515, 1.0614054
    %v1532 = vmul.f32 %v1516, 1.0614054
    %v1533 = vmul.f32 %v1517, 1.0614054
    %v1534 = vmul.f32 %v1518, 1.0614054
    %v1535 = vmul.f32 %v1519, 1.0614054
    %v1536 = vmul.f32 %v1520, 1.0614054
    %v1537 = vmul.f32 %v1521, 1.0614054
    %v1538 = vmul.f32 %v1522, 1.0614054
    %v1539 = vadd.f32 %v1523, -1.4531521
    %v1540 = vadd.f32 %v1524, -1.4531521
    %v1541 = vadd.f32 %v1525, -1.4531521
    %v1542 = vadd.f32 %v1526, -1.4531521
    %v1543 = vadd.f32 %v1527, -1.4531521
    %v1544 = vadd.f32 %v1528, -1.4531521
    %v1545 = vadd.f32 %v1529, -1.4531521
    %v1546 = vadd.f32 %v1530, -1.4531521
    %v1547 = vadd.f32 %v1531, -1.4531521
    %v1548 = vadd.f32 %v1532, -1.4531521
    %v1549 = vadd.f32 %v1533, -1.4531521
    %v1550 = vadd.f32 %v1534, -1.4531521
    %v1551 = vadd.f32 %v1535, -1.4531521
    %v1552 = vadd.f32 %v1536, -1.4531521
    %v1553 = vadd.f32 %v1537, -1.4531521
    %v1554 = vadd.f32 %v1538, -1.4531521
    %v1555 = vmul.f32 %v1539, %v1507
    %v1556 = vmul.f32 %v1540, %v1508
    %v1557 = vmul.f32 %v1541, %v1509
    %v1558 = vmul.f32 %v1542, %v1510
    %v1559 = vmul.f32 %v1543, %v1511
    %v1560 = vmul.f32 %v1544, %v1512
    %v1561 = vmul.f32 %v1545, %v1513
    %v1562 = vmul.f32 %v1546, %v1514
    %v1563 = vmul.f32 %v1547, %v1515
    %v1564 = vmul.f32 %v1548, %v1516
    %v1565 = vmul.f32 %v1549, %v1517
    %v1566 = vmul.f32 %v1550, %v1518
    %v1567 = vmul.f32 %v1551, %v1519
    %v1568 = vmul.f32 %v1552, %v1520
    %v1569 = vmul.f32 %v1553, %v1521
    %v1570 = vmul.f32 %v1554, %v1522
    %v1571 = vadd.f32 %v1555, 1.4214138
    %v1572 = vadd.f32 %v1556, 1.4214138
    %v1573 = vadd.f32 %v1557, 1.4214138
    %v1574 = vadd.f32 %v1558, 1.4214138
    %v1575 = vadd.f32 %v1559, 1.4214138
    %v1576 = vadd.f32 %v1560, 1.4214138
    %v1577 = vadd.f32 %v1561, 1.4214138
    %v1578 = vadd.f32 %v1562, 1.4214138
    %v1579 = vadd.f32 %v1563, 1.4214138
    %v1580 = vadd.f32 %v1564, 1.4214138
    %v1581 = vadd.f32 %v1565, 1.4214138
    %v1582 = vadd.f32 %v1566, 1.4214138
    %v1583 = vadd.f32 %v1567, 1.4214138
    %v1584 = vadd.f32 %v1568, 1.4214138
    %v1585 = vadd.f32 %v1569, 1.4214138
    %v1586 = vadd.f32 %v1570, 1.4214138
    %v1587 = vmul.f32 %v1571, %v1507
    %v1588 = vmul.f32 %v1572, %v1508
    %v1589 = vmul.f32 %v1573, %v1509
    %v1590 = vmul.f32 %v1574, %v1510
    %v1591 = vmul.f32 %v1575, %v1511
    %v1592 = vmul.f32 %v1576, %v1512
    %v1593 = vmul.f32 %v1577, %v1513
    %v1594 = vmul.f32 %v1578, %v1514
    %v1595 = vmul.f32 %v1579, %v1515
    %v1596 = vmul.f32 %v1580, %v1516
    %v1597 = vmul.f32 %v1581, %v1517
    %v1598 = vmul.f32 %v1582, %v1518
    %v1599 = vmul.f32 %v1583, %v1519
    %v1600 = vmul.f32 %v1584, %v1520
    %v1601 = vmul.f32 %v1585, %v1521
    %v1602 = vmul.f32 %v1586, %v1522
    %v1603 = vadd.f32 %v1587, -0.28449672
    %v1604 = vadd.f32 %v1588, -0.28449672
    %v1605 = vadd.f32 %v1589, -0.28449672
    %v1606 = vadd.f32 %v1590, -0.28449672
    %v1607 = vadd.f32 %v1591, -0.28449672
    %v1608 = vadd.f32 %v1592, -0.28449672
    %v1609 = vadd.f32 %v1593, -0.28449672
    %v1610 = vadd.f32 %v1594, -0.28449672
    %v1611 = vadd.f32 %v1595, -0.28449672
    %v1612 = vadd.f32 %v1596, -0.28449672
    %v1613 = vadd.f32 %v1597, -0.28449672
    %v1614 = vadd.f32 %v1598, -0.28449672
    %v1615 = vadd.f32 %v1599, -0.28449672
    %v1616 = vadd.f32 %v1600, -0.28449672
    %v1617 = vadd.f32 %v1601, -0.28449672
    %v1618 = vadd.f32 %v1602, -0.28449672
    %v1619 = vmul.f32 %v1603, %v1507
    %v1620 = vmul.f32 %v1604, %v1508
    %v1621 = vmul.f32 %v1605, %v1509
    %v1622 = vmul.f32 %v1606, %v1510
    %v1623 = vmul.f32 %v1607, %v1511
    %v1624 = vmul.f32 %v1608, %v1512
    %v1625 = vmul.f32 %v1609, %v1513
    %v1626 = vmul.f32 %v1610, %v1514
    %v1627 = vmul.f32 %v1611, %v1515
    %v1628 = vmul.f32 %v1612, %v1516
    %v1629 = vmul.f32 %v1613, %v1517
    %v1630 = vmul.f32 %v1614, %v1518
    %v1631 = vmul.f32 %v1615, %v1519
    %v1632 = vmul.f32 %v1616, %v1520
    %v1633 = vmul.f32 %v1617, %v1521
    %v1634 = vmul.f32 %v1618, %v1522
    %v1635 = vadd.f32 %v1619, 0.2548296
    %v1636 = vadd.f32 %v1620, 0.2548296
    %v1637 = vadd.f32 %v1621, 0.2548296
    %v1638 = vadd.f32 %v1622, 0.2548296
    %v1639 = vadd.f32 %v1623, 0.2548296
    %v1640 = vadd.f32 %v1624, 0.2548296
    %v1641 = vadd.f32 %v1625, 0.2548296
    %v1642 = vadd.f32 %v1626, 0.2548296
    %v1643 = vadd.f32 %v1627, 0.2548296
    %v1644 = vadd.f32 %v1628, 0.2548296
    %v1645 = vadd.f32 %v1629, 0.2548296
    %v1646 = vadd.f32 %v1630, 0.2548296
    %v1647 = vadd.f32 %v1631, 0.2548296
    %v1648 = vadd.f32 %v1632, 0.2548296
    %v1649 = vadd.f32 %v1633, 0.2548296
    %v1650 = vadd.f32 %v1634, 0.2548296
    %v1651 = vmul.f32 %v1635, %v1507
    %v1652 = vmul.f32 %v1636, %v1508
    %v1653 = vmul.f32 %v1637, %v1509
    %v1654 = vmul.f32 %v1638, %v1510
    %v1655 = vmul.f32 %v1639, %v1511
    %v1656 = vmul.f32 %v1640, %v1512
    %v1657 = vmul.f32 %v1641, %v1513
    %v1658 = vmul.f32 %v1642, %v1514
    %v1659 = vmul.f32 %v1643, %v1515
    %v1660 = vmul.f32 %v1644, %v1516
    %v1661 = vmul.f32 %v1645, %v1517
    %v1662 = vmul.f32 %v1646, %v1518
    %v1663 = vmul.f32 %v1647, %v1519
    %v1664 = vmul.f32 %v1648, %v1520
    %v1665 = vmul.f32 %v1649, %v1521
    %v1666 = vmul.f32 %v1650, %v1522
    %v1667 = vsub.f32 0.0, %v1411
    %v1668 = vsub.f32 0.0, %v1412
    %v1669 = vsub.f32 0.0, %v1413
    %v1670 = vsub.f32 0.0, %v1414
    %v1671 = vsub.f32 0.0, %v1415
    %v1672 = vsub.f32 0.0, %v1416
    %v1673 = vsub.f32 0.0, %v1417
    %v1674 = vsub.f32 0.0, %v1418
    %v1675 = vsub.f32 0.0, %v1419
    %v1676 = vsub.f32 0.0, %v1420
    %v1677 = vsub.f32 0.0, %v1421
    %v1678 = vsub.f32 0.0, %v1422
    %v1679 = vsub.f32 0.0, %v1423
    %v1680 = vsub.f32 0.0, %v1424
    %v1681 = vsub.f32 0.0, %v1425
    %v1682 = vsub.f32 0.0, %v1426
    %v1683 = vmul.f32 %v1667, %v1411
    %v1684 = vmul.f32 %v1668, %v1412
    %v1685 = vmul.f32 %v1669, %v1413
    %v1686 = vmul.f32 %v1670, %v1414
    %v1687 = vmul.f32 %v1671, %v1415
    %v1688 = vmul.f32 %v1672, %v1416
    %v1689 = vmul.f32 %v1673, %v1417
    %v1690 = vmul.f32 %v1674, %v1418
    %v1691 = vmul.f32 %v1675, %v1419
    %v1692 = vmul.f32 %v1676, %v1420
    %v1693 = vmul.f32 %v1677, %v1421
    %v1694 = vmul.f32 %v1678, %v1422
    %v1695 = vmul.f32 %v1679, %v1423
    %v1696 = vmul.f32 %v1680, %v1424
    %v1697 = vmul.f32 %v1681, %v1425
    %v1698 = vmul.f32 %v1682, %v1426
    %v1699 = vmul.f32 %v1683, 1.442695
    %v1700 = vpow.pop %v1699
    %v1701 = vmul.f32 %v1684, 1.442695
    %v1702 = vpow.pop %v1701
    %v1703 = vmul.f32 %v1685, 1.442695
    %v1704 = vpow.pop %v1703
    %v1705 = vmul.f32 %v1686, 1.442695
    %v1706 = vpow.pop %v1705
    %v1707 = vmul.f32 %v1687, 1.442695
    %v1708 = vpow.pop %v1707
    %v1709 = vmul.f32 %v1688, 1.442695
    %v1710 = vpow.pop %v1709
    %v1711 = vmul.f32 %v1689, 1.442695
    %v1712 = vpow.pop %v1711
    %v1713 = vmul.f32 %v1690, 1.442695
    %v1714 = vpow.pop %v1713
    %v1715 = vmul.f32 %v1691, 1.442695
    %v1716 = vpow.pop %v1715
    %v1717 = vmul.f32 %v1692, 1.442695
    %v1718 = vpow.pop %v1717
    %v1719 = vmul.f32 %v1693, 1.442695
    %v1720 = vpow.pop %v1719
    %v1721 = vmul.f32 %v1694, 1.442695
    %v1722 = vpow.pop %v1721
    %v1723 = vmul.f32 %v1695, 1.442695
    %v1724 = vpow.pop %v1723
    %v1725 = vmul.f32 %v1696, 1.442695
    %v1726 = vpow.pop %v1725
    %v1727 = vmul.f32 %v1697, 1.442695
    %v1728 = vpow.pop %v1727
    %v1729 = vmul.f32 %v1698, 1.442695
    %v1730 = vpow.pop %v1729
    %v1731 = vmul.f32 %v1651, %v1700
    %v1732 = vmul.f32 %v1652, %v1702
    %v1733 = vmul.f32 %v1653, %v1704
    %v1734 = vmul.f32 %v1654, %v1706
    %v1735 = vmul.f32 %v1655, %v1708
    %v1736 = vmul.f32 %v1656, %v1710
    %v1737 = vmul.f32 %v1657, %v1712
    %v1738 = vmul.f32 %v1658, %v1714
    %v1739 = vmul.f32 %v1659, %v1716
    %v1740 = vmul.f32 %v1660, %v1718
    %v1741 = vmul.f32 %v1661, %v1720
    %v1742 = vmul.f32 %v1662, %v1722
    %v1743 = vmul.f32 %v1663, %v1724
    %v1744 = vmul.f32 %v1664, %v1726
    %v1745 = vmul.f32 %v1665, %v1728
    %v1746 = vmul.f32 %v1666, %v1730
    %v1747 = vsub.f32 1.0, %v1731
    %v1748 = vsub.f32 1.0, %v1732
    %v1749 = vsub.f32 1.0, %v1733
    %v1750 = vsub.f32 1.0, %v1734
    %v1751 = vsub.f32 1.0, %v1735
    %v1752 = vsub.f32 1.0, %v1736
    %v1753 = vsub.f32 1.0, %v1737
    %v1754 = vsub.f32 1.0, %v1738
    %v1755 = vsub.f32 1.0, %v1739
    %v1756 = vsub.f32 1.0, %v1740
    %v1757 = vsub.f32 1.0, %v1741
    %v1758 = vsub.f32 1.0, %v1742
    %v1759 = vsub.f32 1.0, %v1743
    %v1760 = vsub.f32 1.0, %v1744
    %v1761 = vsub.f32 1.0, %v1745
    %v1762 = vsub.f32 1.0, %v1746
    %v1763 = vmul.f32 %v1395, %v1747
    %v1764 = vmul.f32 %v1396, %v1748
    %v1765 = vmul.f32 %v1397, %v1749
    %v1766 = vmul.f32 %v1398, %v1750
    %v1767 = vmul.f32 %v1399, %v1751
    %v1768 = vmul.f32 %v1400, %v1752
    %v1769 = vmul.f32 %v1401, %v1753
    %v1770 = vmul.f32 %v1402, %v1754
    %v1771 = vmul.f32 %v1403, %v1755
    %v1772 = vmul.f32 %v1404, %v1756
    %v1773 = vmul.f32 %v1405, %v1757
    %v1774 = vmul.f32 %v1406, %v1758
    %v1775 = vmul.f32 %v1407, %v1759
    %v1776 = vmul.f32 %v1408, %v1760
    %v1777 = vmul.f32 %v1409, %v1761
    %v1778 = vmul.f32 %v1410, %v1762
    %v1779 = vadd.f32 %v1763, 1.0
    %v1780 = vadd.f32 %v1764, 1.0
    %v1781 = vadd.f32 %v1765, 1.0
    %v1782 = vadd.f32 %v1766, 1.0
    %v1783 = vadd.f32 %v1767, 1.0
    %v1784 = vadd.f32 %v1768, 1.0
    %v1785 = vadd.f32 %v1769, 1.0
    %v1786 = vadd.f32 %v1770, 1.0
    %v1787 = vadd.f32 %v1771, 1.0
    %v1788 = vadd.f32 %v1772, 1.0
    %v1789 = vadd.f32 %v1773, 1.0
    %v1790 = vadd.f32 %v1774, 1.0
    %v1791 = vadd.f32 %v1775, 1.0
    %v1792 = vadd.f32 %v1776, 1.0
    %v1793 = vadd.f32 %v1777, 1.0
    %v1794 = vadd.f32 %v1778, 1.0
    %v1795 = vmul.f32 %v1347, %v1779
    %v1796 = vmul.f32 %v1348, %v1780
    %v1797 = vmul.f32 %v1349, %v1781
    %v1798 = vmul.f32 %v1350, %v1782
    %v1799 = vmul.f32 %v1351, %v1783
    %v1800 = vmul.f32 %v1352, %v1784
    %v1801 = vmul.f32 %v1353, %v1785
    %v1802 = vmul.f32 %v1354, %v1786
    %v1803 = vmul.f32 %v1355, %v1787
    %v1804 = vmul.f32 %v1356, %v1788
    %v1805 = vmul.f32 %v1357, %v1789
    %v1806 = vmul.f32 %v1358, %v1790
    %v1807 = vmul.f32 %v1359, %v1791
    %v1808 = vmul.f32 %v1360, %v1792
    %v1809 = vmul.f32 %v1361, %v1793
    %v1810 = vmul.f32 %v1362, %v1794
    %v1811 = vld [vmem:[%s9] sm:$0x1]
    %v1812 = vld [vmem:[%s10] sm:$0x1]
    %v1814 = vlaneseq
    %v1815 = vshrl.u32 %v1814, 7
    %v1816 = vsub.s32 0, %v1815
    %v1817 = vrot.slane %v1811, %v1816
    %v1819 = vmul.f32 %v1795, %v1817
    %vm1820 = vcmask 1041408
    %v1821 = vsel %vm1820, %v1819, 0.0
    %1822 = vadd.xlane.f32.xlu0 %v1821
    %v1823 = vpop.xlane.xlu0 %1822
    %v1825 = vlaneseq
    %v1826 = vshrl.u32 %v1825, 7
    %v1827 = vsub.s32 0, %v1826
    %v1828 = vrot.slane %v1812, %v1827
    %v1830 = vadd.f32 %v1823, %v1828
    %vm1831 = vcmask 1024
    %1832 = vst.msk [vmem:[#allocation8] sm:$0x3] %vm1831, %v1830
    %v1833 = vmul.f32 %v1796, %v1817
    %v1834 = vsel %vm1820, %v1833, 0.0
    %1835 = vadd.xlane.f32.xlu0 %v1834
    %v1836 = vpop.xlane.xlu0 %1835
    %v1837 = vadd.f32 %v1836, %v1828
    %vm1838 = vcmask 9224
    %1839 = vst.msk [vmem:[#allocation8] sm:$0x3] %vm1838, %v1837
    %v1840 = vmul.f32 %v1797, %v1817
    %v1841 = vsel %vm1820, %v1840, 0.0
    %1842 = vadd.xlane.f32.xlu0 %v1841
    %v1843 = vpop.xlane.xlu0 %1842
    %v1844 = vadd.f32 %v1843, %v1828
    %vm1845 = vcmask 17424
    %1846 = vst.msk [vmem:[#allocation8] sm:$0x3] %vm1845, %v1844
    %v1847 = vmul.f32 %v1798, %v1817
    %v1848 = vsel %vm1820, %v1847, 0.0
    %1849 = vadd.xlane.f32.xlu0 %v1848
    %v1850 = vpop.xlane.xlu0 %1849
    %v1851 = vadd.f32 %v1850, %v1828
    %vm1852 = vcmask 25624
    %1853 = vst.msk [vmem:[#allocation8] sm:$0x3] %vm1852, %v1851
    %v1854 = vmul.f32 %v1799, %v1817
    %v1855 = vsel %vm1820, %v1854, 0.0
    %1856 = vadd.xlane.f32.xlu0 %v1855
    %v1857 = vpop.xlane.xlu0 %1856
    %v1858 = vadd.f32 %v1857, %v1828
    %vm1859 = vcmask 33824
    %1860 = vst.msk [vmem:[#allocation8] sm:$0x3] %vm1859, %v1858
    %v1861 = vmul.f32 %v1800, %v1817
    %v1862 = vsel %vm1820, %v1861, 0.0
    %1863 = vadd.xlane.f32.xlu0 %v1862
    %v1864 = vpop.xlane.xlu0 %1863
    %v1865 = vadd.f32 %v1864, %v1828
    %vm1866 = vcmask 42024
    %1867 = vst.msk [vmem:[#allocation8] sm:$0x3] %vm1866, %v1865
    %v1868 = vmul.f32 %v1801, %v1817
    %v1869 = vsel %vm1820, %v1868, 0.0
    %1870 = vadd.xlane.f32.xlu0 %v1869
    %v1871 = vpop.xlane.xlu0 %1870
    %v1872 = vadd.f32 %v1871, %v1828
    %vm1873 = vcmask 50224
    %1874 = vst.msk [vmem:[#allocation8] sm:$0x3] %vm1873, %v1872
    %v1875 = vmul.f32 %v1802, %v1817
    %v1876 = vsel %vm1820, %v1875, 0.0
    %1877 = vadd.xlane.f32.xlu0 %v1876
    %v1878 = vpop.xlane.xlu0 %1877
    %v1879 = vadd.f32 %v1878, %v1828
    %vm1880 = vcmask 58424
    %1881 = vst.msk [vmem:[#allocation8] sm:$0x3] %vm1880, %v1879
    %v1882 = vmul.f32 %v1803, %v1817
    %v1883 = vsel %vm1820, %v1882, 0.0
    %1884 = vadd.xlane.f32.xlu0 %v1883
    %v1885 = vpop.xlane.xlu0 %1884
    %v1886 = vadd.f32 %v1885, %v1828
    %vm1887 = vcmask 66624
    %1888 = vst.msk [vmem:[#allocation8] sm:$0x3] %vm1887, %v1886
    %v1889 = vmul.f32 %v1804, %v1817
    %v1890 = vsel %vm1820, %v1889, 0.0
    %1891 = vadd.xlane.f32.xlu0 %v1890
    %v1892 = vpop.xlane.xlu0 %1891
    %v1893 = vadd.f32 %v1892, %v1828
    %vm1894 = vcmask 74824
    %1895 = vst.msk [vmem:[#allocation8] sm:$0x3] %vm1894, %v1893
    %v1896 = vmul.f32 %v1805, %v1817
    %v1897 = vsel %vm1820, %v1896, 0.0
    %1898 = vadd.xlane.f32.xlu0 %v1897
    %v1899 = vpop.xlane.xlu0 %1898
    %v1900 = vadd.f32 %v1899, %v1828
    %vm1901 = vcmask 83024
    %1902 = vst.msk [vmem:[#allocation8] sm:$0x3] %vm1901, %v1900
    %v1903 = vmul.f32 %v1806, %v1817
    %v1904 = vsel %vm1820, %v1903, 0.0
    %1905 = vadd.xlane.f32.xlu0 %v1904
    %v1906 = vpop.xlane.xlu0 %1905
    %v1907 = vadd.f32 %v1906, %v1828
    %vm1908 = vcmask 91224
    %1909 = vst.msk [vmem:[#allocation8] sm:$0x3] %vm1908, %v1907
    %v1910 = vmul.f32 %v1807, %v1817
    %v1911 = vsel %vm1820, %v1910, 0.0
    %1912 = vadd.xlane.f32.xlu0 %v1911
    %v1913 = vpop.xlane.xlu0 %1912
    %v1914 = vadd.f32 %v1913, %v1828
    %vm1915 = vcmask 99424
    %1916 = vst.msk [vmem:[#allocation8] sm:$0x3] %vm1915, %v1914
    %v1917 = vmul.f32 %v1808, %v1817
    %v1918 = vsel %vm1820, %v1917, 0.0
    %1919 = vadd.xlane.f32.xlu0 %v1918
    %v1920 = vpop.xlane.xlu0 %1919
    %v1921 = vadd.f32 %v1920, %v1828
    %vm1922 = vcmask 107624
    %1923 = vst.msk [vmem:[#allocation8] sm:$0x3] %vm1922, %v1921
    %v1924 = vmul.f32 %v1809, %v1817
    %v1925 = vsel %vm1820, %v1924, 0.0
    %1926 = vadd.xlane.f32.xlu0 %v1925
    %v1927 = vpop.xlane.xlu0 %1926
    %v1928 = vadd.f32 %v1927, %v1828
    %vm1929 = vcmask 115824
    %1930 = vst.msk [vmem:[#allocation8] sm:$0x3] %vm1929, %v1928
    %v1931 = vmul.f32 %v1810, %v1817
    %v1932 = vsel %vm1820, %v1931, 0.0
    %1933 = vadd.xlane.f32.xlu0 %v1932
    %v1934 = vpop.xlane.xlu0 %1933
    %v1935 = vadd.f32 %v1934, %v1828
    %vm1936 = vcmask 124024
    %1937 = vst.msk [vmem:[#allocation8] sm:$0x3] %vm1936, %v1935
    // Predicated region
    $region58: #{fno1d_forward.1} parent=1 // pred_check
      _
    $region59: #{fno1d_forward.1} parent=1 // pred_check_branch
      %1939 = sbr.rel (0) target = $region61
    $region60: #{fno1d_forward.1} parent=1 // pred_region
      %s1941 = ssub.s32 32, 32
      %1942 = vsyncadd [#allocation4], %s1941
      %s1944 = sshll.u32 [#allocation8], 4
      %s1945 = int_to_ptr.vmem [resolvable:$true] %s1944
      %1947 = dma.vmem_to_hbm [thread:$0]  %s1945, 32, %s11, [#allocation4]
    $region61: #{fno1d_forward.1} parent=1 // pred_fallthru
      _
    // Predicated region
    $region62: #{fno1d_forward.1} parent=1 // pred_check
      _
    $region63: #{fno1d_forward.1} parent=1 // pred_check_branch
      %1949 = sbr.rel (0) target = $region65
    $region64: #{fno1d_forward.1} parent=1 // pred_region
      %1950 = dma.done [#allocation4], 32
    $region65: #{fno1d_forward.1} parent=1 // pred_fallthru
      _
    %1951 = vsyncpa [#allocation3], 1
    %1952 = vsyncpa [#allocation6], 1
    %1953 = vsyncpa [#allocation4], 1

</llo_original>
